<compile_context>
chip_gen: v5e
topology: v5e:2x2
jax: 0.10.0
libtpu: 0.0.40
codegen_flags: <defaults>
</compile_context>

<pallas_src>
import functools

import jax
import jax.numpy as jnp
from jax.experimental import pallas as pl
from jax.experimental.pallas import tpu as pltpu


# -----------------------------------------------------------------------------
# Pallas kernel: cost matrix C[q, m] for one (batch, Q-block), P tiled.
# -----------------------------------------------------------------------------
def matcher_cost_kernel(om_ref, tmT_ref, diff_ref, onehot_ref, obox_ref,
                        tboxT_ref, tmsum_ref, out_ref,
                        lin_acc, sgt_acc, rsp_acc, rsg_acc, *,
                        inv_p, cost_mask_w, cost_dice_w, cost_box_w,
                        cost_giou_w):
    p = pl.program_id(2)

    @pl.when(p == 0)
    def _init():
        lin_acc[...] = jnp.zeros_like(lin_acc)
        sgt_acc[...] = jnp.zeros_like(sgt_acc)
        rsp_acc[...] = jnp.zeros_like(rsp_acc)
        rsg_acc[...] = jnp.zeros_like(rsg_acc)

    om_bf = om_ref[0]              # (TQ, TP) bf16 pred-mask logits at points
    tmT = tmT_ref[0]               # (TP, Mp) bf16 target masks^T (unscaled)

    # MXU: raw om @ tm^T, accumulated in f32 (weights applied in the epilogue).
    lin_acc[...] += jnp.dot(om_bf, tmT, preferred_element_type=jnp.float32)

    # VPU/EUP: softplus(om); sigmoid derived from it (one fewer transcendental).
    om = om_bf.astype(jnp.float32)
    softplus = jnp.maximum(om, 0.0) + jnp.log1p(jnp.exp(-jnp.abs(om)))
    sig = 1.0 - jnp.exp(-softplus)
    rsp_acc[...] += jnp.sum(softplus, axis=-1, keepdims=True)
    rsg_acc[...] += jnp.sum(sig, axis=-1, keepdims=True)

    # MXU: sigmoid(om) @ tm^T for the dice numerator.
    sgt_acc[...] += jnp.dot(sig.astype(jnp.bfloat16), tmT,
                            preferred_element_type=jnp.float32)

    @pl.when(p == pl.num_programs(2) - 1)
    def _epilogue():
        # Class (focal) cost as a gather-matmul against the one-hot labels.
        # cost_class_w is folded into `diff` in the wrapper.
        cls = jnp.dot(diff_ref[0], onehot_ref[0],
                      preferred_element_type=jnp.float32)               # (TQ, Mp)

        # Mask sigmoid-CE:  w_mask/P * (rowsum(softplus(om)) - om @ tm^T)
        mask_ce = (cost_mask_w * inv_p) * (rsp_acc[...] - lin_acc[...])

        # Dice:  w_dice * (1 - (2*sig@tm^T + 1) / (rowsum(sig) + sum(tm) + 1))
        denom_inv = pl.reciprocal(rsg_acc[...] + tmsum_ref[0] + 1.0,
                                  approx=True)
        dice = cost_dice_w - (2.0 * cost_dice_w * sgt_acc[...]
                              + cost_dice_w) * denom_inv

        # Box L1 + GIoU cost (f32, VPU).
        ob = obox_ref[0]                                # (TQ, 4)  cxcywh
        tbT = tboxT_ref[0]                              # (4, Mp)  cxcywh^T
        ocx, ocy, ow, oh = ob[:, 0:1], ob[:, 1:2], ob[:, 2:3], ob[:, 3:4]
        tcx, tcy, tw, th = tbT[0:1, :], tbT[1:2, :], tbT[2:3, :], tbT[3:4, :]
        cost_bbox = (jnp.abs(ocx - tcx) + jnp.abs(ocy - tcy)
                     + jnp.abs(ow - tw) + jnp.abs(oh - th))             # (TQ, Mp)

        ox0, oy0 = ocx - 0.5 * ow, ocy - 0.5 * oh
        ox1, oy1 = ocx + 0.5 * ow, ocy + 0.5 * oh
        tx0, ty0 = tcx - 0.5 * tw, tcy - 0.5 * th
        tx1, ty1 = tcx + 0.5 * tw, tcy + 0.5 * th
        area_o = (ox1 - ox0) * (oy1 - oy0)
        area_t = (tx1 - tx0) * (ty1 - ty0)
        iw = jnp.maximum(jnp.minimum(ox1, tx1) - jnp.maximum(ox0, tx0), 0.0)
        ih = jnp.maximum(jnp.minimum(oy1, ty1) - jnp.maximum(oy0, ty0), 0.0)
        inter = iw * ih
        union = area_o + area_t - inter
        iou = inter * pl.reciprocal(union, approx=True)
        ew = jnp.maximum(jnp.maximum(ox1, tx1) - jnp.minimum(ox0, tx0), 0.0)
        eh = jnp.maximum(jnp.maximum(oy1, ty1) - jnp.minimum(oy0, ty0), 0.0)
        enclose = ew * eh
        giou = iou - (enclose - union) * pl.reciprocal(enclose, approx=True)

        out_ref[0] = (cls + mask_ce + dice
                      + cost_box_w * cost_bbox - cost_giou_w * giou)


# -----------------------------------------------------------------------------
# Wrapper
# -----------------------------------------------------------------------------
def hungarian_matcher_cost(pred_logits, tgt_labels, pred_boxes, tgt_boxes,
                           out_mask_pts, tgt_mask_pts, weights,
                           *, block_q=128, block_p=2048):
    """Returns the per-batch matching cost matrix C of shape (B, Q, M)."""
    B, Q, C = pred_logits.shape
    M = tgt_labels.shape[-1]
    P = out_mask_pts.shape[-1]
    f32, bf16 = jnp.float32, jnp.bfloat16

    Mp = pl.cdiv(M, 128) * 128                 # lane-dense target axis

    # Q tiling ("parallel").
    TQ = Q if Q <= block_q else block_q
    Qp = pl.cdiv(Q, TQ) * TQ

    # P tiling ("arbitrary" reduction axis).
    if P <= block_p:
        TP, Pp = P, P
    else:
        TP = block_p
        Pp = pl.cdiv(P, TP) * TP

    # Focal class-cost difference, f32 with the reference's eps form, already
    # scaled by cost_class_w (tiny Q x C tensor; dropped from the kernel).
    prob = jax.nn.sigmoid(pred_logits.astype(f32))
    alpha, gamma = 0.25, 2.0
    pos_c = alpha * (1.0 - prob) ** gamma * -jnp.log(prob + 1e-8)
    neg_c = (1.0 - alpha) * prob ** gamma * -jnp.log(1.0 - prob + 1e-8)
    diff = weights["cost_class_w"] * (pos_c - neg_c)                    # (B,Q,C)
    diff_p = jnp.zeros((B, Qp, C), bf16).at[:, :Q, :].set(diff.astype(bf16))

    # One-hot class labels, transposed to (C, Mp).  Padded targets get label -1
    # -> all-zero one-hot column -> zero class cost (sliced away anyway).
    labels_p = jnp.full((B, Mp), -1, jnp.int32).at[:, :M].set(
        tgt_labels.astype(jnp.int32))
    onehot = (labels_p[:, None, :] ==
              jnp.arange(C, dtype=jnp.int32)[None, :, None]).astype(bf16)

    # Target masks^T, unscaled bf16 (shared by the mask-CE and dice dots).
    tm = tgt_mask_pts.astype(f32)                                       # (B,M,P)
    tmT = jnp.zeros((B, Pp, Mp), f32).at[:, :P, :M].set(
        jnp.swapaxes(tm, 1, 2)).astype(bf16)

    # Per-target mask sums (over the real P points), precomputed in f32.
    tmsum = jnp.zeros((B, 1, Mp), f32).at[:, 0, :M].set(jnp.sum(tm, axis=-1))

    # Target boxes^T; pad columns with unit boxes so padded (sliced-away)
    # columns never hit 0/0 in the IoU math.
    tboxT = (jnp.zeros((B, 4, Mp), f32)
             + jnp.array([0.5, 0.5, 1.0, 1.0], f32)[None, :, None])
    tboxT = tboxT.at[:, :, :M].set(jnp.swapaxes(tgt_boxes.astype(f32), 1, 2))

    # Pred boxes; pad rows with a benign box.
    obox = jnp.full((B, Qp, 4), 0.5, f32).at[:, :Q, :].set(
        pred_boxes.astype(f32))

    # Pred-mask logits at points, bf16.  Padded P columns use -30 so that
    # softplus/sigmoid contributions from padding are ~0 (<1e-13).
    om = jnp.full((B, Qp, Pp), -30.0, f32).at[:, :Q, :P].set(
        out_mask_pts.astype(f32)).astype(bf16)

    kernel = functools.partial(
        matcher_cost_kernel,
        inv_p=1.0 / float(P),
        cost_mask_w=weights["cost_mask_w"],
        cost_dice_w=weights["cost_dice_w"],
        cost_box_w=weights["cost_box_w"],
        cost_giou_w=weights["cost_giou_w"])

    cost = pl.pallas_call(
        kernel,
        out_shape=jax.ShapeDtypeStruct((B, Qp, Mp), f32),
        grid=(B, Qp // TQ, Pp // TP),
        in_specs=[
            pl.BlockSpec((1, TQ, TP), lambda b, q, p: (b, q, p)),   # om
            pl.BlockSpec((1, TP, Mp), lambda b, q, p: (b, p, 0)),   # tm^T
            pl.BlockSpec((1, TQ, C), lambda b, q, p: (b, q, 0)),    # class diff
            pl.BlockSpec((1, C, Mp), lambda b, q, p: (b, 0, 0)),    # one-hot
            pl.BlockSpec((1, TQ, 4), lambda b, q, p: (b, q, 0)),    # pred boxes
            pl.BlockSpec((1, 4, Mp), lambda b, q, p: (b, 0, 0)),    # tgt boxes^T
            pl.BlockSpec((1, 1, Mp), lambda b, q, p: (b, 0, 0)),    # tm sums
        ],
        out_specs=pl.BlockSpec((1, TQ, Mp), lambda b, q, p: (b, q, 0)),
        scratch_shapes=[
            pltpu.VMEM((TQ, Mp), jnp.float32),     # om @ tm^T accumulator
            pltpu.VMEM((TQ, Mp), jnp.float32),     # sig @ tm^T accumulator
            pltpu.VMEM((TQ, 1), jnp.float32),      # rowsum(softplus)
            pltpu.VMEM((TQ, 1), jnp.float32),      # rowsum(sigmoid)
        ],
        compiler_params=pltpu.CompilerParams(
            dimension_semantics=("parallel", "parallel", "arbitrary")),
    )(om, tmT, diff_p, onehot, obox, tboxT, tmsum)

    return cost[:, :Q, :M]


# -----------------------------------------------------------------------------
# Glue: point_sample (grid_sample bilinear, align_corners=False, zero padding)
# -----------------------------------------------------------------------------
def point_sample(masks, coords):
    # masks: (N, H, W) float, coords: (P, 2) in [0, 1], (x, y) order
    N, H, W = masks.shape
    x = coords[:, 0] * W - 0.5
    y = coords[:, 1] * H - 0.5
    x0 = jnp.floor(x).astype(jnp.int32)
    y0 = jnp.floor(y).astype(jnp.int32)
    x1, y1 = x0 + 1, y0 + 1
    wx1 = x - x0.astype(jnp.float32)
    wy1 = y - y0.astype(jnp.float32)
    wx0, wy0 = 1.0 - wx1, 1.0 - wy1

    def gather(yy, xx):
        valid = ((yy >= 0) & (yy < H) & (xx >= 0) & (xx < W)).astype(masks.dtype)
        yyc = jnp.clip(yy, 0, H - 1)
        xxc = jnp.clip(xx, 0, W - 1)
        return masks[:, yyc, xxc] * valid[None, :]

    return (gather(y0, x0) * (wy0 * wx0)[None, :]
            + gather(y0, x1) * (wy0 * wx1)[None, :]
            + gather(y1, x0) * (wy1 * wx0)[None, :]
            + gather(y1, x1) * (wy1 * wx1)[None, :])


# -----------------------------------------------------------------------------
# Pure-JAX reference (mirrors the PyTorch math) for a single batch element.
# -----------------------------------------------------------------------------
def reference_cost(logits_b, ids_b, obox_b, tbox_b, om_b, tm_b, w):
    prob = jax.nn.sigmoid(logits_b)
    alpha = 0.25
    neg = (1 - alpha) * (prob * prob) * -jnp.log(1 - prob + 1e-8)
    pos = alpha * ((1 - prob) * (1 - prob)) * -jnp.log(prob + 1e-8)
    cost_class = pos[:, ids_b] - neg[:, ids_b]

    cost_bbox = jnp.sum(jnp.abs(obox_b[:, None, :] - tbox_b[None, :, :]), -1)

    def to_xyxy(b):
        cx, cy, ww, hh = b[:, 0], b[:, 1], b[:, 2], b[:, 3]
        return jnp.stack([cx - ww / 2, cy - hh / 2, cx + ww / 2, cy + hh / 2], -1)

    b1, b2 = to_xyxy(obox_b), to_xyxy(tbox_b)
    area1 = (b1[:, 2] - b1[:, 0]) * (b1[:, 3] - b1[:, 1])
    area2 = (b2[:, 2] - b2[:, 0]) * (b2[:, 3] - b2[:, 1])
    lt = jnp.maximum(b1[:, None, :2], b2[None, :, :2])
    rb = jnp.minimum(b1[:, None, 2:], b2[None, :, 2:])
    wh = jnp.clip(rb - lt, 0)
    inter = wh[..., 0] * wh[..., 1]
    union = area1[:, None] + area2[None, :] - inter
    iou = inter / union
    lte = jnp.minimum(b1[:, None, :2], b2[None, :, :2])
    rbe = jnp.maximum(b1[:, None, 2:], b2[None, :, 2:])
    whe = jnp.clip(rbe - lte, 0)
    areae = whe[..., 0] * whe[..., 1]
    cost_giou = -(iou - (areae - union) / areae)

    P = om_b.shape[1]
    stable = jnp.log1p(jnp.exp(-jnp.abs(om_b)))
    posb = jnp.maximum(om_b, 0) - om_b + stable
    negb = jnp.maximum(om_b, 0) + stable
    cost_mask = (posb @ tm_b.T + negb @ (1 - tm_b).T) / P
    sig = jax.nn.sigmoid(om_b)
    numer = 2 * sig @ tm_b.T
    denom = sig.sum(-1)[:, None] + tm_b.sum(-1)[None, :]
    cost_dice = 1 - (numer + 1) / (denom + 1)

    return (w["cost_mask_w"] * cost_mask + w["cost_class_w"] * cost_class
            + w["cost_dice_w"] * cost_dice + w["cost_box_w"] * cost_bbox
            + w["cost_giou_w"] * cost_giou)


if __name__ == "__main__":
    # HungarianMatcher "config" (module __init__ args) — no learned parameters.
    weights = dict(cost_class_w=2.0, cost_mask_w=5.0, cost_dice_w=5.0,
                   cost_box_w=5.0, cost_giou_w=2.0)
    num_points = 200     # not a multiple of the 128-point P tile -> tests padding

    B, Q, NC, M, H, W = 2, 16, 8, 8, 16, 16

    key = jax.random.PRNGKey(0)
    k1, k2, k3, k4, k5, k6, k7 = jax.random.split(key, 7)
    pred_logits = jax.random.normal(k1, (B, Q, NC), jnp.float32)
    pred_boxes = jax.random.uniform(k2, (B, Q, 4), jnp.float32,
                                    minval=0.1, maxval=0.9)
    pred_masks = jax.random.normal(k3, (B, Q, H, W), jnp.float32)
    tgt_labels = jax.random.randint(k4, (B, M), 0, NC, jnp.int32)
    tgt_boxes = jax.random.uniform(k5, (B, M, 4), jnp.float32,
                                   minval=0.1, maxval=0.9)
    tgt_masks = (jax.random.uniform(k6, (B, M, H, W)) > 0.5).astype(jnp.float32)
    point_coords = jax.random.uniform(k7, (B, num_points, 2), jnp.float32)

    # Glue: bilinear point sampling of pred / target masks (same points per batch).
    out_mask_pts = jax.vmap(point_sample)(pred_masks, point_coords)   # (B, Q, P)
    tgt_mask_pts = jax.vmap(point_sample)(tgt_masks, point_coords)    # (B, M, P)

    # block_p=128 exercises the multi-step P reduction + padding paths.
    cost = hungarian_matcher_cost(pred_logits, tgt_labels, pred_boxes,
                                  tgt_boxes, out_mask_pts, tgt_mask_pts,
                                  weights, block_p=128)
    cost = jax.block_until_ready(cost)

    # Correctness check against the pure-JAX f32 reference of the PyTorch math.
    ref = jnp.stack([
        reference_cost(pred_logits[b], tgt_labels[b], pred_boxes[b],
                       tgt_boxes[b], out_mask_pts[b], tgt_mask_pts[b], weights)
        for b in range(B)
    ])
    assert cost.shape == (B, Q, M)
    err = float(jnp.max(jnp.abs(cost - ref)))
    scale = float(jnp.max(jnp.abs(ref)))
    # bf16 matmul operands + approx reciprocals -> relaxed tolerance.
    assert err <= 0.02 * scale + 0.05, (err, scale)

    print("KERNEL_OK")
</pallas_src>

<mosaic_0001>
module attributes {stable_mosaic.version = 11 : i64} {
  func.func @matcher_cost_kernel(%arg0: i32, %arg1: i32, %arg2: i32, %arg3: memref<1x16x128xbf16, #tpu.memory_space<vmem>>, %arg4: memref<1x128x128xbf16, #tpu.memory_space<vmem>>, %arg5: memref<1x16x8xbf16, #tpu.memory_space<vmem>>, %arg6: memref<1x8x128xbf16, #tpu.memory_space<vmem>>, %arg7: memref<1x16x4xf32, #tpu.memory_space<vmem>>, %arg8: memref<1x4x128xf32, #tpu.memory_space<vmem>>, %arg9: memref<1x1x128xf32, #tpu.memory_space<vmem>>, %arg10: memref<1x16x128xf32, #tpu.memory_space<vmem>>, %arg11: memref<16x128xf32, #tpu.memory_space<vmem>>, %arg12: memref<16x128xf32, #tpu.memory_space<vmem>>, %arg13: memref<16x1xf32, #tpu.memory_space<vmem>>, %arg14: memref<16x1xf32, #tpu.memory_space<vmem>>) attributes {dimension_semantics = [#tpu.dimension_semantics<parallel>, #tpu.dimension_semantics<parallel>, #tpu.dimension_semantics<arbitrary>], iteration_bounds = array<i64: 2, 1, 2>, scalar_prefetch = 0 : i64, scratch_operands = 4 : i64, tpu.core_type = #tpu.core_type<tc>, window_params = [{transform_indices = @transform_0, window_bounds = array<i64: 1, 16, 128>}, {transform_indices = @transform_1, window_bounds = array<i64: 1, 128, 128>}, {transform_indices = @transform_2, window_bounds = array<i64: 1, 16, 8>}, {transform_indices = @transform_3, window_bounds = array<i64: 1, 8, 128>}, {transform_indices = @transform_4, window_bounds = array<i64: 1, 16, 4>}, {transform_indices = @transform_5, window_bounds = array<i64: 1, 4, 128>}, {transform_indices = @transform_6, window_bounds = array<i64: 1, 1, 128>}, {transform_indices = @transform_7, window_bounds = array<i64: 1, 16, 128>}]} {
    %c0_i32 = arith.constant 0 : i32
    %0 = arith.cmpi eq, %arg2, %c0_i32 : i32
    %1 = arith.extui %0 : i1 to i32
    %c0_i32_0 = arith.constant 0 : i32
    %2 = arith.cmpi ne, %1, %c0_i32_0 : i32
    scf.if %2 {
      %cst_30 = arith.constant 0.000000e+00 : f32
      %43 = vector.broadcast %cst_30 : f32 to vector<16x128xf32>
      %c0_31 = arith.constant 0 : index
      %c0_32 = arith.constant 0 : index
      %44 = vector.load %arg11[%c0_31, %c0_32] : memref<16x128xf32, #tpu.memory_space<vmem>>, vector<16x128xf32>
      tpu.vector_store %arg11[%c0_31, %c0_32], %43 {strides = array<i32>} : memref<16x128xf32, #tpu.memory_space<vmem>>, vector<16x128xf32>,
      %cst_33 = arith.constant 0.000000e+00 : f32
      %45 = vector.broadcast %cst_33 : f32 to vector<16x128xf32>
      %c0_34 = arith.constant 0 : index
      %c0_35 = arith.constant 0 : index
      %46 = vector.load %arg12[%c0_34, %c0_35] : memref<16x128xf32, #tpu.memory_space<vmem>>, vector<16x128xf32>
      tpu.vector_store %arg12[%c0_34, %c0_35], %45 {strides = array<i32>} : memref<16x128xf32, #tpu.memory_space<vmem>>, vector<16x128xf32>,
      %cst_36 = arith.constant 0.000000e+00 : f32
      %47 = vector.broadcast %cst_36 : f32 to vector<16x1xf32>
      %c0_37 = arith.constant 0 : index
      %c0_38 = arith.constant 0 : index
      %48 = vector.load %arg13[%c0_37, %c0_38] : memref<16x1xf32, #tpu.memory_space<vmem>>, vector<16x1xf32>
      tpu.vector_store %arg13[%c0_37, %c0_38], %47 {strides = array<i32>} : memref<16x1xf32, #tpu.memory_space<vmem>>, vector<16x1xf32>,
      %cst_39 = arith.constant 0.000000e+00 : f32
      %49 = vector.broadcast %cst_39 : f32 to vector<16x1xf32>
      %c0_40 = arith.constant 0 : index
      %c0_41 = arith.constant 0 : index
      %50 = vector.load %arg14[%c0_40, %c0_41] : memref<16x1xf32, #tpu.memory_space<vmem>>, vector<16x1xf32>
      tpu.vector_store %arg14[%c0_40, %c0_41], %49 {strides = array<i32>} : memref<16x1xf32, #tpu.memory_space<vmem>>, vector<16x1xf32>,
    } else {
    }
    %c0 = arith.constant 0 : index
    %c0_1 = arith.constant 0 : index
    %c0_2 = arith.constant 0 : index
    %3 = vector.load %arg3[%c0, %c0_1, %c0_2] : memref<1x16x128xbf16, #tpu.memory_space<vmem>>, vector<1x16x128xbf16>
    %4 = vector.shape_cast %3 : vector<1x16x128xbf16> to vector<16x128xbf16>
    %c0_3 = arith.constant 0 : index
    %c0_4 = arith.constant 0 : index
    %c0_5 = arith.constant 0 : index
    %5 = vector.load %arg4[%c0_3, %c0_4, %c0_5] : memref<1x128x128xbf16, #tpu.memory_space<vmem>>, vector<1x128x128xbf16>
    %6 = vector.shape_cast %5 : vector<1x128x128xbf16> to vector<128x128xbf16>
    %c0_6 = arith.constant 0 : index
    %c0_7 = arith.constant 0 : index
    %7 = vector.load %arg11[%c0_6, %c0_7] : memref<16x128xf32, #tpu.memory_space<vmem>>, vector<16x128xf32>
    %cst = arith.constant dense<0.000000e+00> : vector<16x128xf32>
    %8 = tpu.matmul %4, %6, %cst {dimension_numbers = #tpu.dot_dimension_numbers<[1], [0], [0], [1], [0, 0, 1, 1], [], []>} : vector<16x128xbf16>, vector<128x128xbf16>, vector<16x128xf32> -> vector<16x128xf32>
    %9 = arith.addf %7, %8 : vector<16x128xf32>
    %c0_8 = arith.constant 0 : index
    %c0_9 = arith.constant 0 : index
    %10 = vector.load %arg11[%c0_8, %c0_9] : memref<16x128xf32, #tpu.memory_space<vmem>>, vector<16x128xf32>
    tpu.vector_store %arg11[%c0_8, %c0_9], %9 {strides = array<i32>} : memref<16x128xf32, #tpu.memory_space<vmem>>, vector<16x128xf32>,
    %11 = arith.extf %4 : vector<16x128xbf16> to vector<16x128xf32>
    %cst_10 = arith.constant 0.000000e+00 : f32
    %12 = vector.broadcast %cst_10 : f32 to vector<16x128xf32>
    %13 = arith.maximumf %11, %12 : vector<16x128xf32>
    %14 = math.absf %11 : vector<16x128xf32>
    %cst_11 = arith.constant 0.000000e+00 : f32
    %15 = vector.broadcast %cst_11 : f32 to vector<16x128xf32>
    %16 = arith.subf %15, %14 : vector<16x128xf32>
    %17 = math.exp %16 : vector<16x128xf32>
    %18 = math.log1p %17 : vector<16x128xf32>
    %19 = arith.addf %13, %18 : vector<16x128xf32>
    %cst_12 = arith.constant 0.000000e+00 : f32
    %20 = vector.broadcast %cst_12 : f32 to vector<16x128xf32>
    %21 = arith.subf %20, %19 : vector<16x128xf32>
    %22 = math.exp %21 : vector<16x128xf32>
    %cst_13 = arith.constant 1.000000e+00 : f32
    %23 = vector.broadcast %cst_13 : f32 to vector<16x128xf32>
    %24 = arith.subf %23, %22 : vector<16x128xf32>
    %c0_14 = arith.constant 0 : index
    %c0_15 = arith.constant 0 : index
    %25 = vector.load %arg13[%c0_14, %c0_15] : memref<16x1xf32, #tpu.memory_space<vmem>>, vector<16x1xf32>
    %cst_16 = arith.constant dense<0.000000e+00> : vector<16xf32>
    %26 = vector.multi_reduction <add>, %19, %cst_16 [1] : vector<16x128xf32> to vector<16xf32>
    %27 = vector.shape_cast %26 : vector<16xf32> to vector<16x1xf32>
    %28 = arith.addf %25, %27 : vector<16x1xf32>
    %c0_17 = arith.constant 0 : index
    %c0_18 = arith.constant 0 : index
    %29 = vector.load %arg13[%c0_17, %c0_18] : memref<16x1xf32, #tpu.memory_space<vmem>>, vector<16x1xf32>
    tpu.vector_store %arg13[%c0_17, %c0_18], %28 {strides = array<i32>} : memref<16x1xf32, #tpu.memory_space<vmem>>, vector<16x1xf32>,
    %c0_19 = arith.constant 0 : index
    %c0_20 = arith.constant 0 : index
    %30 = vector.load %arg14[%c0_19, %c0_20] : memref<16x1xf32, #tpu.memory_space<vmem>>, vector<16x1xf32>
    %cst_21 = arith.constant dense<0.000000e+00> : vector<16xf32>
    %31 = vector.multi_reduction <add>, %24, %cst_21 [1] : vector<16x128xf32> to vector<16xf32>
    %32 = vector.shape_cast %31 : vector<16xf32> to vector<16x1xf32>
    %33 = arith.addf %30, %32 : vector<16x1xf32>
    %c0_22 = arith.constant 0 : index
    %c0_23 = arith.constant 0 : index
    %34 = vector.load %arg14[%c0_22, %c0_23] : memref<16x1xf32, #tpu.memory_space<vmem>>, vector<16x1xf32>
    tpu.vector_store %arg14[%c0_22, %c0_23], %33 {strides = array<i32>} : memref<16x1xf32, #tpu.memory_space<vmem>>, vector<16x1xf32>,
    %c0_24 = arith.constant 0 : index
    %c0_25 = arith.constant 0 : index
    %35 = vector.load %arg12[%c0_24, %c0_25] : memref<16x128xf32, #tpu.memory_space<vmem>>, vector<16x128xf32>
    %36 = arith.truncf %24 : vector<16x128xf32> to vector<16x128xbf16>
    %cst_26 = arith.constant dense<0.000000e+00> : vector<16x128xf32>
    %37 = tpu.matmul %36, %6, %cst_26 {dimension_numbers = #tpu.dot_dimension_numbers<[1], [0], [0], [1], [0, 0, 1, 1], [], []>} : vector<16x128xbf16>, vector<128x128xbf16>, vector<16x128xf32> -> vector<16x128xf32>
    %38 = arith.addf %35, %37 : vector<16x128xf32>
    %c0_27 = arith.constant 0 : index
    %c0_28 = arith.constant 0 : index
    %39 = vector.load %arg12[%c0_27, %c0_28] : memref<16x128xf32, #tpu.memory_space<vmem>>, vector<16x128xf32>
    tpu.vector_store %arg12[%c0_27, %c0_28], %38 {strides = array<i32>} : memref<16x128xf32, #tpu.memory_space<vmem>>, vector<16x128xf32>,
    %c1_i32 = arith.constant 1 : i32
    %40 = arith.cmpi eq, %arg2, %c1_i32 : i32
    %41 = arith.extui %40 : i1 to i32
    %c0_i32_29 = arith.constant 0 : i32
    %42 = arith.cmpi ne, %41, %c0_i32_29 : i32
    scf.if %42 {
      %c0_30 = arith.constant 0 : index
      %c0_31 = arith.constant 0 : index
      %c0_32 = arith.constant 0 : index
      %43 = vector.load %arg5[%c0_30, %c0_31, %c0_32] : memref<1x16x8xbf16, #tpu.memory_space<vmem>>, vector<1x16x8xbf16>
      %44 = vector.shape_cast %43 : vector<1x16x8xbf16> to vector<16x8xbf16>
      %c0_33 = arith.constant 0 : index
      %c0_34 = arith.constant 0 : index
      %c0_35 = arith.constant 0 : index
      %45 = vector.load %arg6[%c0_33, %c0_34, %c0_35] : memref<1x8x128xbf16, #tpu.memory_space<vmem>>, vector<1x8x128xbf16>
      %46 = vector.shape_cast %45 : vector<1x8x128xbf16> to vector<8x128xbf16>
      %cst_36 = arith.constant dense<0.000000e+00> : vector<16x128xf32>
      %47 = tpu.matmul %44, %46, %cst_36 {dimension_numbers = #tpu.dot_dimension_numbers<[1], [0], [0], [1], [0, 0, 1, 1], [], []>} : vector<16x8xbf16>, vector<8x128xbf16>, vector<16x128xf32> -> vector<16x128xf32>
      %c0_37 = arith.constant 0 : index
      %c0_38 = arith.constant 0 : index
      %48 = vector.load %arg13[%c0_37, %c0_38] : memref<16x1xf32, #tpu.memory_space<vmem>>, vector<16x1xf32>
      %c0_39 = arith.constant 0 : index
      %c0_40 = arith.constant 0 : index
      %49 = vector.load %arg11[%c0_39, %c0_40] : memref<16x128xf32, #tpu.memory_space<vmem>>, vector<16x128xf32>
      %50 = vector.broadcast %48 : vector<16x1xf32> to vector<16x128xf32>
      %51 = arith.subf %50, %49 : vector<16x128xf32>
      %cst_41 = arith.constant 2.500000e-02 : f32
      %52 = vector.broadcast %cst_41 : f32 to vector<16x128xf32>
      %53 = arith.mulf %52, %51 : vector<16x128xf32>
      %c0_42 = arith.constant 0 : index
      %c0_43 = arith.constant 0 : index
      %54 = vector.load %arg14[%c0_42, %c0_43] : memref<16x1xf32, #tpu.memory_space<vmem>>, vector<16x1xf32>
      %c0_44 = arith.constant 0 : index
      %c0_45 = arith.constant 0 : index
      %c0_46 = arith.constant 0 : index
      %55 = vector.load %arg9[%c0_44, %c0_45, %c0_46] : memref<1x1x128xf32, #tpu.memory_space<vmem>>, vector<1x1x128xf32>
      %56 = vector.shape_cast %55 : vector<1x1x128xf32> to vector<1x128xf32>
      %57 = vector.broadcast %54 : vector<16x1xf32> to vector<16x128xf32>
      %58 = vector.broadcast %56 : vector<1x128xf32> to vector<16x128xf32>
      %59 = arith.addf %57, %58 : vector<16x128xf32>
      %cst_47 = arith.constant 1.000000e+00 : f32
      %60 = vector.broadcast %cst_47 : f32 to vector<16x128xf32>
      %61 = arith.addf %59, %60 : vector<16x128xf32>
      %62 = tpu.reciprocal %61 {approx = true} : vector<16x128xf32> -> vector<16x128xf32>
      %c0_48 = arith.constant 0 : index
      %c0_49 = arith.constant 0 : index
      %63 = vector.load %arg12[%c0_48, %c0_49] : memref<16x128xf32, #tpu.memory_space<vmem>>, vector<16x128xf32>
      %cst_50 = arith.constant 1.000000e+01 : f32
      %64 = vector.broadcast %cst_50 : f32 to vector<16x128xf32>
      %65 = arith.mulf %64, %63 : vector<16x128xf32>
      %cst_51 = arith.constant 5.000000e+00 : f32
      %66 = vector.broadcast %cst_51 : f32 to vector<16x128xf32>
      %67 = arith.addf %65, %66 : vector<16x128xf32>
      %68 = arith.mulf %67, %62 : vector<16x128xf32>
      %cst_52 = arith.constant 5.000000e+00 : f32
      %69 = vector.broadcast %cst_52 : f32 to vector<16x128xf32>
      %70 = arith.subf %69, %68 : vector<16x128xf32>
      %c0_53 = arith.constant 0 : index
      %c0_54 = arith.constant 0 : index
      %c0_55 = arith.constant 0 : index
      %71 = vector.load %arg7[%c0_53, %c0_54, %c0_55] : memref<1x16x4xf32, #tpu.memory_space<vmem>>, vector<1x16x4xf32>
      %72 = vector.shape_cast %71 : vector<1x16x4xf32> to vector<16x4xf32>
      %c0_56 = arith.constant 0 : index
      %c0_57 = arith.constant 0 : index
      %c0_58 = arith.constant 0 : index
      %73 = vector.load %arg8[%c0_56, %c0_57, %c0_58] : memref<1x4x128xf32, #tpu.memory_space<vmem>>, vector<1x4x128xf32>
      %74 = vector.shape_cast %73 : vector<1x4x128xf32> to vector<4x128xf32>
      %75 = vector.extract_strided_slice %72 {offsets = [0, 0], sizes = [16, 1], strides = [1, 1]} : vector<16x4xf32> to vector<16x1xf32>
      %76 = vector.extract_strided_slice %72 {offsets = [0, 1], sizes = [16, 1], strides = [1, 1]} : vector<16x4xf32> to vector<16x1xf32>
      %77 = vector.extract_strided_slice %72 {offsets = [0, 2], sizes = [16, 1], strides = [1, 1]} : vector<16x4xf32> to vector<16x1xf32>
      %78 = vector.extract_strided_slice %72 {offsets = [0, 3], sizes = [16, 1], strides = [1, 1]} : vector<16x4xf32> to vector<16x1xf32>
      %79 = vector.extract_strided_slice %74 {offsets = [0, 0], sizes = [1, 128], strides = [1, 1]} : vector<4x128xf32> to vector<1x128xf32>
      %80 = vector.extract_strided_slice %74 {offsets = [1, 0], sizes = [1, 128], strides = [1, 1]} : vector<4x128xf32> to vector<1x128xf32>
      %81 = vector.extract_strided_slice %74 {offsets = [2, 0], sizes = [1, 128], strides = [1, 1]} : vector<4x128xf32> to vector<1x128xf32>
      %82 = vector.extract_strided_slice %74 {offsets = [3, 0], sizes = [1, 128], strides = [1, 1]} : vector<4x128xf32> to vector<1x128xf32>
      %83 = vector.broadcast %75 : vector<16x1xf32> to vector<16x128xf32>
      %84 = vector.broadcast %79 : vector<1x128xf32> to vector<16x128xf32>
      %85 = arith.subf %83, %84 : vector<16x128xf32>
      %86 = math.absf %85 : vector<16x128xf32>
      %87 = vector.broadcast %76 : vector<16x1xf32> to vector<16x128xf32>
      %88 = vector.broadcast %80 : vector<1x128xf32> to vector<16x128xf32>
      %89 = arith.subf %87, %88 : vector<16x128xf32>
      %90 = math.absf %89 : vector<16x128xf32>
      %91 = arith.addf %86, %90 : vector<16x128xf32>
      %92 = vector.broadcast %77 : vector<16x1xf32> to vector<16x128xf32>
      %93 = vector.broadcast %81 : vector<1x128xf32> to vector<16x128xf32>
      %94 = arith.subf %92, %93 : vector<16x128xf32>
      %95 = math.absf %94 : vector<16x128xf32>
      %96 = arith.addf %91, %95 : vector<16x128xf32>
      %97 = vector.broadcast %78 : vector<16x1xf32> to vector<16x128xf32>
      %98 = vector.broadcast %82 : vector<1x128xf32> to vector<16x128xf32>
      %99 = arith.subf %97, %98 : vector<16x128xf32>
      %100 = math.absf %99 : vector<16x128xf32>
      %101 = arith.addf %96, %100 : vector<16x128xf32>
      %cst_59 = arith.constant 5.000000e-01 : f32
      %102 = vector.broadcast %cst_59 : f32 to vector<16x1xf32>
      %103 = arith.mulf %102, %77 : vector<16x1xf32>
      %104 = arith.subf %75, %103 : vector<16x1xf32>
      %cst_60 = arith.constant 5.000000e-01 : f32
      %105 = vector.broadcast %cst_60 : f32 to vector<16x1xf32>
      %106 = arith.mulf %105, %78 : vector<16x1xf32>
      %107 = arith.subf %76, %106 : vector<16x1xf32>
      %cst_61 = arith.constant 5.000000e-01 : f32
      %108 = vector.broadcast %cst_61 : f32 to vector<16x1xf32>
      %109 = arith.mulf %108, %77 : vector<16x1xf32>
      %110 = arith.addf %75, %109 : vector<16x1xf32>
      %cst_62 = arith.constant 5.000000e-01 : f32
      %111 = vector.broadcast %cst_62 : f32 to vector<16x1xf32>
      %112 = arith.mulf %111, %78 : vector<16x1xf32>
      %113 = arith.addf %76, %112 : vector<16x1xf32>
      %cst_63 = arith.constant 5.000000e-01 : f32
      %114 = vector.broadcast %cst_63 : f32 to vector<1x128xf32>
      %115 = arith.mulf %114, %81 : vector<1x128xf32>
      %116 = arith.subf %79, %115 : vector<1x128xf32>
      %cst_64 = arith.constant 5.000000e-01 : f32
      %117 = vector.broadcast %cst_64 : f32 to vector<1x128xf32>
      %118 = arith.mulf %117, %82 : vector<1x128xf32>
      %119 = arith.subf %80, %118 : vector<1x128xf32>
      %cst_65 = arith.constant 5.000000e-01 : f32
      %120 = vector.broadcast %cst_65 : f32 to vector<1x128xf32>
      %121 = arith.mulf %120, %81 : vector<1x128xf32>
      %122 = arith.addf %79, %121 : vector<1x128xf32>
      %cst_66 = arith.constant 5.000000e-01 : f32
      %123 = vector.broadcast %cst_66 : f32 to vector<1x128xf32>
      %124 = arith.mulf %123, %82 : vector<1x128xf32>
      %125 = arith.addf %80, %124 : vector<1x128xf32>
      %126 = arith.subf %110, %104 : vector<16x1xf32>
      %127 = arith.subf %113, %107 : vector<16x1xf32>
      %128 = arith.mulf %126, %127 : vector<16x1xf32>
      %129 = arith.subf %122, %116 : vector<1x128xf32>
      %130 = arith.subf %125, %119 : vector<1x128xf32>
      %131 = arith.mulf %129, %130 : vector<1x128xf32>
      %132 = vector.broadcast %110 : vector<16x1xf32> to vector<16x128xf32>
      %133 = vector.broadcast %122 : vector<1x128xf32> to vector<16x128xf32>
      %134 = arith.minimumf %132, %133 : vector<16x128xf32>
      %135 = vector.broadcast %104 : vector<16x1xf32> to vector<16x128xf32>
      %136 = vector.broadcast %116 : vector<1x128xf32> to vector<16x128xf32>
      %137 = arith.maximumf %135, %136 : vector<16x128xf32>
      %138 = arith.subf %134, %137 : vector<16x128xf32>
      %cst_67 = arith.constant 0.000000e+00 : f32
      %139 = vector.broadcast %cst_67 : f32 to vector<16x128xf32>
      %140 = arith.maximumf %138, %139 : vector<16x128xf32>
      %141 = vector.broadcast %113 : vector<16x1xf32> to vector<16x128xf32>
      %142 = vector.broadcast %125 : vector<1x128xf32> to vector<16x128xf32>
      %143 = arith.minimumf %141, %142 : vector<16x128xf32>
      %144 = vector.broadcast %107 : vector<16x1xf32> to vector<16x128xf32>
      %145 = vector.broadcast %119 : vector<1x128xf32> to vector<16x128xf32>
      %146 = arith.maximumf %144, %145 : vector<16x128xf32>
      %147 = arith.subf %143, %146 : vector<16x128xf32>
      %cst_68 = arith.constant 0.000000e+00 : f32
      %148 = vector.broadcast %cst_68 : f32 to vector<16x128xf32>
      %149 = arith.maximumf %147, %148 : vector<16x128xf32>
      %150 = arith.mulf %140, %149 : vector<16x128xf32>
      %151 = vector.broadcast %128 : vector<16x1xf32> to vector<16x128xf32>
      %152 = vector.broadcast %131 : vector<1x128xf32> to vector<16x128xf32>
      %153 = arith.addf %151, %152 : vector<16x128xf32>
      %154 = arith.subf %153, %150 : vector<16x128xf32>
      %155 = tpu.reciprocal %154 {approx = true} : vector<16x128xf32> -> vector<16x128xf32>
      %156 = arith.mulf %150, %155 : vector<16x128xf32>
      %157 = vector.broadcast %110 : vector<16x1xf32> to vector<16x128xf32>
      %158 = vector.broadcast %122 : vector<1x128xf32> to vector<16x128xf32>
      %159 = arith.maximumf %157, %158 : vector<16x128xf32>
      %160 = vector.broadcast %104 : vector<16x1xf32> to vector<16x128xf32>
      %161 = vector.broadcast %116 : vector<1x128xf32> to vector<16x128xf32>
      %162 = arith.minimumf %160, %161 : vector<16x128xf32>
      %163 = arith.subf %159, %162 : vector<16x128xf32>
      %cst_69 = arith.constant 0.000000e+00 : f32
      %164 = vector.broadcast %cst_69 : f32 to vector<16x128xf32>
      %165 = arith.maximumf %163, %164 : vector<16x128xf32>
      %166 = vector.broadcast %113 : vector<16x1xf32> to vector<16x128xf32>
      %167 = vector.broadcast %125 : vector<1x128xf32> to vector<16x128xf32>
      %168 = arith.maximumf %166, %167 : vector<16x128xf32>
      %169 = vector.broadcast %107 : vector<16x1xf32> to vector<16x128xf32>
      %170 = vector.broadcast %119 : vector<1x128xf32> to vector<16x128xf32>
      %171 = arith.minimumf %169, %170 : vector<16x128xf32>
      %172 = arith.subf %168, %171 : vector<16x128xf32>
      %cst_70 = arith.constant 0.000000e+00 : f32
      %173 = vector.broadcast %cst_70 : f32 to vector<16x128xf32>
      %174 = arith.maximumf %172, %173 : vector<16x128xf32>
      %175 = arith.mulf %165, %174 : vector<16x128xf32>
      %176 = arith.subf %175, %154 : vector<16x128xf32>
      %177 = tpu.reciprocal %175 {approx = true} : vector<16x128xf32> -> vector<16x128xf32>
      %178 = arith.mulf %176, %177 : vector<16x128xf32>
      %179 = arith.subf %156, %178 : vector<16x128xf32>
      %180 = arith.addf %47, %53 : vector<16x128xf32>
      %181 = arith.addf %180, %70 : vector<16x128xf32>
      %cst_71 = arith.constant 5.000000e+00 : f32
      %182 = vector.broadcast %cst_71 : f32 to vector<16x128xf32>
      %183 = arith.mulf %182, %101 : vector<16x128xf32>
      %184 = arith.addf %181, %183 : vector<16x128xf32>
      %cst_72 = arith.constant 2.000000e+00 : f32
      %185 = vector.broadcast %cst_72 : f32 to vector<16x128xf32>
      %186 = arith.mulf %185, %179 : vector<16x128xf32>
      %187 = arith.subf %184, %186 : vector<16x128xf32>
      %c0_73 = arith.constant 0 : index
      %c0_74 = arith.constant 0 : index
      %c0_75 = arith.constant 0 : index
      %188 = vector.load %arg10[%c0_73, %c0_74, %c0_75] : memref<1x16x128xf32, #tpu.memory_space<vmem>>, vector<1x16x128xf32>
      %189 = vector.shape_cast %188 : vector<1x16x128xf32> to vector<16x128xf32>
      %190 = vector.shape_cast %187 : vector<16x128xf32> to vector<1x16x128xf32>
      tpu.vector_store %arg10[%c0_73, %c0_74, %c0_75], %190 {strides = array<i32>} : memref<1x16x128xf32, #tpu.memory_space<vmem>>, vector<1x16x128xf32>,
    } else {
    }
    return
  }
  func.func @transform_0(%arg0: i32, %arg1: i32, %arg2: i32) -> (i32, i32, i32) {
    %c0_i32 = arith.constant 0 : i32
    return %arg0, %arg1, %arg2 : i32, i32, i32
  }
  func.func @transform_1(%arg0: i32, %arg1: i32, %arg2: i32) -> (i32, i32, i32) {
    %c0_i32 = arith.constant 0 : i32
    %c0_i32_0 = arith.constant 0 : i32
    return %arg0, %arg2, %c0_i32 : i32, i32, i32
  }
  func.func @transform_2(%arg0: i32, %arg1: i32, %arg2: i32) -> (i32, i32, i32) {
    %c0_i32 = arith.constant 0 : i32
    %c0_i32_0 = arith.constant 0 : i32
    return %arg0, %arg1, %c0_i32 : i32, i32, i32
  }
  func.func @transform_3(%arg0: i32, %arg1: i32, %arg2: i32) -> (i32, i32, i32) {
    %c0_i32 = arith.constant 0 : i32
    %c0_i32_0 = arith.constant 0 : i32
    %c0_i32_1 = arith.constant 0 : i32
    return %arg0, %c0_i32, %c0_i32_0 : i32, i32, i32
  }
  func.func @transform_4(%arg0: i32, %arg1: i32, %arg2: i32) -> (i32, i32, i32) {
    %c0_i32 = arith.constant 0 : i32
    %c0_i32_0 = arith.constant 0 : i32
    return %arg0, %arg1, %c0_i32 : i32, i32, i32
  }
  func.func @transform_5(%arg0: i32, %arg1: i32, %arg2: i32) -> (i32, i32, i32) {
    %c0_i32 = arith.constant 0 : i32
    %c0_i32_0 = arith.constant 0 : i32
    %c0_i32_1 = arith.constant 0 : i32
    return %arg0, %c0_i32, %c0_i32_0 : i32, i32, i32
  }
  func.func @transform_6(%arg0: i32, %arg1: i32, %arg2: i32) -> (i32, i32, i32) {
    %c0_i32 = arith.constant 0 : i32
    %c0_i32_0 = arith.constant 0 : i32
    %c0_i32_1 = arith.constant 0 : i32
    return %arg0, %c0_i32, %c0_i32_0 : i32, i32, i32
  }
  func.func @transform_7(%arg0: i32, %arg1: i32, %arg2: i32) -> (i32, i32, i32) {
    %c0_i32 = arith.constant 0 : i32
    %c0_i32_0 = arith.constant 0 : i32
    return %arg0, %arg1, %c0_i32 : i32, i32, i32
  }
}

</mosaic_0001>

<llo_original>
// kernel: tpu_custom_call.1
$region0: #{tpu_custom_call.1}
  #allocation0 [shape = 'u32[]', space=smem, size = 0x4, offset = 0x4, fixed_abs, tag = 'smem constant byte address 0x4 - core index']
  #allocation1 [shape = 'u32[72,128]{1,0:T(1,128)}', space=vmem, size = 0x9000, scoped, tag = 'internal scratch']
  #allocation2 [shape = 'f32[16,128]{1,0:T(8,128)}', space=vmem, size = 0x2000, scoped, tag = 'scratch operand']
  #allocation3 [shape = 'f32[16,128]{1,0:T(8,128)}', space=vmem, size = 0x2000, scoped, tag = 'scratch operand']
  #allocation4 [shape = 'f32[16,1]{1,0:T(8,128)}', space=vmem, size = 0x2000, scoped, tag = 'scratch operand']
  #allocation5 [shape = 'f32[16,1]{1,0:T(8,128)}', space=vmem, size = 0x2000, scoped, tag = 'scratch operand']
  %s0 = inlined_call_operand.vmem [shape: bf16[2,16,256], index: 0, kind: input, shape index: {}]
  %s1 = inlined_call_operand.hbm [shape: bf16[2,256,128], index: 1, kind: input, shape index: {}]
  %s2 = inlined_call_operand.vmem [shape: bf16[2,16,8], index: 2, kind: input, shape index: {}]
  %s3 = inlined_call_operand.vmem [shape: bf16[2,8,128], index: 3, kind: input, shape index: {}]
  %s4 = inlined_call_operand.vmem [shape: f32[2,16,4], index: 4, kind: input, shape index: {}]
  %s5 = inlined_call_operand.vmem [shape: f32[2,4,128], index: 5, kind: input, shape index: {}]
  %s6 = inlined_call_operand.vmem [shape: f32[2,1,128], index: 6, kind: input, shape index: {}]
  %s7 = inlined_call_operand.hbm [shape: f32[2,16,128], index: 7, kind: output, shape index: {}]
  %s8 = sld [smem:[#allocation0]]
  $region114: #{tpu_custom_call.1} parent=0
    _
  %s10 = ssub.s32 1, %s8
  %s11 = scalar_select 0, %s10, %s8
  $region1: #{tpu_custom_call.1} parent=0
    #allocation6 [shape = 'u8[8192]{0}', space=vmem, size = 0x2000, scoped, tag = 'input window, operand 0']
    #allocation7 [shape = 'u8[65536]{0}', space=vmem, size = 0x10000, scoped, tag = 'input window, operand 1']
    #allocation8 [shape = 's32[2]{0}', space=sflag, size = 0x8, scoped, tag = 'scoped memory for tpu_custom_call.1']
    #allocation9 [shape = 's32[2]{0}', space=sflag, size = 0x8, scoped, tag = 'scoped memory for tpu_custom_call.1']
    #allocation10 [shape = 'u8[16384]{0}', space=vmem, size = 0x4000, scoped, tag = 'output window, operand 0']
    %12 = vsyncpa [#allocation8], 0
    %s13 = scalar_lea.sflag [#allocation8], 1
    %14 = vsyncpa %s13, 0
    %15 = vsyncpa [#allocation9], 0
    %s16 = scalar_lea.sflag [#allocation9], 1
    %17 = vsyncpa %s16, 0
    loop: start=0, step=1, limit=6
    $region2: #{tpu_custom_call.1} parent=1 // loop_pre_header
      _
    $region3: #{tpu_custom_call.1} parent=1 // loop_header
      %s19 = sphi 0, %s23
      %p20 = scmp.ge.s32.totalorder %s19, 6
      %s26 = sphi 0, %s45
      %s27 = sphi 0, %s41
      %s28 = sphi 0, %s37
      %s29 = sphi 0, %s26
      %s30 = sphi 0, %s27
      %s31 = sphi 0, %s28
      %s32 = sphi 0, %s29
      %s33 = sphi 0, %s30
      %s34 = sphi 0, %s31
      %s52 = sphi 0, %s54
      %s55 = sphi 0, %s52
      %s56 = sphi 0, %s55
      %s72 = sphi 0, %s56
      %s80 = sphi 0, %s82
      %s83 = sphi 0, %s80
      %s84 = sphi 0, %s83
      %s100 = sphi 0, %s84
      %s108 = sphi 0, %s110
      %s111 = sphi 0, %s108
      %s112 = sphi 0, %s111
      %s128 = sphi 0, %s112
      %s134 = sphi 0, %s136
      %s137 = sphi 0, %s134
      %s138 = sphi 0, %s137
      %s154 = sphi 0, %s138
      %s162 = sphi 0, %s164
      %s165 = sphi 0, %s162
      %s166 = sphi 0, %s165
      %s182 = sphi 0, %s166
      %s188 = sphi 0, %s190
      %s191 = sphi 0, %s188
      %s192 = sphi 0, %s191
      %s208 = sphi 0, %s192
      %s214 = sphi 0, %s216
      %s217 = sphi 0, %s214
      %s218 = sphi 0, %s217
      %s234 = sphi 0, %s218
      %s242 = sphi 0, %s244
      %s245 = sphi 0, %s242
      %s246 = sphi 0, %s245
      %s262 = sphi 0, %s246
    $region4: #{tpu_custom_call.1} parent=1 // loop_header_branch
      %22 = sbr.rel (%p20) target = $region8
    $region5: #{tpu_custom_call.1} parent=1 // loop_body
      %s24 = ssub.s32 %s19, 1
      %s25 = ssub.s32 %s19, 2
      %s35 = sadd.s32 1, %s28
      %p36 = scmp.ge.s32.totalorder %s35, 2
      %s37 = scalar_select %p36, 0, %s35
      %s38 = sadd.s32 1, %s27
      %s39 = scalar_select %p36, %s38, %s27
      %p40 = scmp.ge.s32.totalorder %s39, 1
      %s41 = scalar_select %p40, 0, %s39
      %s42 = sadd.s32 1, %s26
      %s43 = scalar_select %p40, %s42, %s26
      %p44 = scmp.ge.s32.totalorder %s43, 2
      %s45 = scalar_select %p44, 0, %s43
      %s46 = ssub.s32 %s26, %s45
      %s47 = ssub.s32 %s27, %s41
      %s48 = sor.u32 %s46, %s47
      %s49 = ssub.s32 %s28, %s37
      %s50 = sor.u32 %s48, %s49
      %p51 = scmp.eq.s32.totalorder %s50, 0
      %s53 = sadd.s32 %s52, 1
      %s54 = scalar_select %p51, %s52, %s53
      %p57 = pneg %p51
      %p58 = scmp.eq.s32.totalorder %s19, 3
      %p59 = por %p57, %p58
      %p60 = scmp.ne.s32.totalorder %s52, %s55
      %p61 = scmp.eq.s32.totalorder %s19, 0
      %p62 = por %p60, %p61
      %p63 = scmp.ne.s32.totalorder %s52, %s55
      %p64 = scmp.eq.s32.totalorder %s24, 3
      %p65 = por %p63, %p64
      %p66 = scmp.ne.s32.totalorder %s55, %s56
      %p67 = scmp.eq.s32.totalorder %s24, 0
      %p68 = por %p66, %p67
      %p69 = scmp.ne.s32.totalorder %s55, %s56
      %p70 = scmp.eq.s32.totalorder %s25, 3
      %p71 = por %p69, %p70
      %p73 = scmp.ne.s32.totalorder %s56, %s72
      %p74 = scmp.eq.s32.totalorder %s25, 0
      %p75 = por %p73, %p74
      %s76 = ssub.s32 %s26, %s45
      %s77 = ssub.s32 %s28, %s37
      %s78 = sor.u32 %s76, %s77
      %p79 = scmp.eq.s32.totalorder %s78, 0
      %s81 = sadd.s32 %s80, 1
      %s82 = scalar_select %p79, %s80, %s81
      %p85 = pneg %p79
      %p86 = scmp.eq.s32.totalorder %s19, 3
      %p87 = por %p85, %p86
      %p88 = scmp.ne.s32.totalorder %s80, %s83
      %p89 = scmp.eq.s32.totalorder %s19, 0
      %p90 = por %p88, %p89
      %p91 = scmp.ne.s32.totalorder %s80, %s83
      %p92 = scmp.eq.s32.totalorder %s24, 3
      %p93 = por %p91, %p92
      %p94 = scmp.ne.s32.totalorder %s83, %s84
      %p95 = scmp.eq.s32.totalorder %s24, 0
      %p96 = por %p94, %p95
      %p97 = scmp.ne.s32.totalorder %s83, %s84
      %p98 = scmp.eq.s32.totalorder %s25, 3
      %p99 = por %p97, %p98
      %p101 = scmp.ne.s32.totalorder %s84, %s100
      %p102 = scmp.eq.s32.totalorder %s25, 0
      %p103 = por %p101, %p102
      %s104 = ssub.s32 %s26, %s45
      %s105 = ssub.s32 %s27, %s41
      %s106 = sor.u32 %s104, %s105
      %p107 = scmp.eq.s32.totalorder %s106, 0
      %s109 = sadd.s32 %s108, 1
      %s110 = scalar_select %p107, %s108, %s109
      %p113 = pneg %p107
      %p114 = scmp.eq.s32.totalorder %s19, 3
      %p115 = por %p113, %p114
      %p116 = scmp.ne.s32.totalorder %s108, %s111
      %p117 = scmp.eq.s32.totalorder %s19, 0
      %p118 = por %p116, %p117
      %p119 = scmp.ne.s32.totalorder %s108, %s111
      %p120 = scmp.eq.s32.totalorder %s24, 3
      %p121 = por %p119, %p120
      %p122 = scmp.ne.s32.totalorder %s111, %s112
      %p123 = scmp.eq.s32.totalorder %s24, 0
      %p124 = por %p122, %p123
      %p125 = scmp.ne.s32.totalorder %s111, %s112
      %p126 = scmp.eq.s32.totalorder %s25, 3
      %p127 = por %p125, %p126
      %p129 = scmp.ne.s32.totalorder %s112, %s128
      %p130 = scmp.eq.s32.totalorder %s25, 0
      %p131 = por %p129, %p130
      %s132 = ssub.s32 %s26, %s45
      %p133 = scmp.eq.s32.totalorder %s132, 0
      %s135 = sadd.s32 %s134, 1
      %s136 = scalar_select %p133, %s134, %s135
      %p139 = pneg %p133
      %p140 = scmp.eq.s32.totalorder %s19, 3
      %p141 = por %p139, %p140
      %p142 = scmp.ne.s32.totalorder %s134, %s137
      %p143 = scmp.eq.s32.totalorder %s19, 0
      %p144 = por %p142, %p143
      %p145 = scmp.ne.s32.totalorder %s134, %s137
      %p146 = scmp.eq.s32.totalorder %s24, 3
      %p147 = por %p145, %p146
      %p148 = scmp.ne.s32.totalorder %s137, %s138
      %p149 = scmp.eq.s32.totalorder %s24, 0
      %p150 = por %p148, %p149
      %p151 = scmp.ne.s32.totalorder %s137, %s138
      %p152 = scmp.eq.s32.totalorder %s25, 3
      %p153 = por %p151, %p152
      %p155 = scmp.ne.s32.totalorder %s138, %s154
      %p156 = scmp.eq.s32.totalorder %s25, 0
      %p157 = por %p155, %p156
      %s158 = ssub.s32 %s26, %s45
      %s159 = ssub.s32 %s27, %s41
      %s160 = sor.u32 %s158, %s159
      %p161 = scmp.eq.s32.totalorder %s160, 0
      %s163 = sadd.s32 %s162, 1
      %s164 = scalar_select %p161, %s162, %s163
      %p167 = pneg %p161
      %p168 = scmp.eq.s32.totalorder %s19, 3
      %p169 = por %p167, %p168
      %p170 = scmp.ne.s32.totalorder %s162, %s165
      %p171 = scmp.eq.s32.totalorder %s19, 0
      %p172 = por %p170, %p171
      %p173 = scmp.ne.s32.totalorder %s162, %s165
      %p174 = scmp.eq.s32.totalorder %s24, 3
      %p175 = por %p173, %p174
      %p176 = scmp.ne.s32.totalorder %s165, %s166
      %p177 = scmp.eq.s32.totalorder %s24, 0
      %p178 = por %p176, %p177
      %p179 = scmp.ne.s32.totalorder %s165, %s166
      %p180 = scmp.eq.s32.totalorder %s25, 3
      %p181 = por %p179, %p180
      %p183 = scmp.ne.s32.totalorder %s166, %s182
      %p184 = scmp.eq.s32.totalorder %s25, 0
      %p185 = por %p183, %p184
      %s186 = ssub.s32 %s26, %s45
      %p187 = scmp.eq.s32.totalorder %s186, 0
      %s189 = sadd.s32 %s188, 1
      %s190 = scalar_select %p187, %s188, %s189
      %p193 = pneg %p187
      %p194 = scmp.eq.s32.totalorder %s19, 3
      %p195 = por %p193, %p194
      %p196 = scmp.ne.s32.totalorder %s188, %s191
      %p197 = scmp.eq.s32.totalorder %s19, 0
      %p198 = por %p196, %p197
      %p199 = scmp.ne.s32.totalorder %s188, %s191
      %p200 = scmp.eq.s32.totalorder %s24, 3
      %p201 = por %p199, %p200
      %p202 = scmp.ne.s32.totalorder %s191, %s192
      %p203 = scmp.eq.s32.totalorder %s24, 0
      %p204 = por %p202, %p203
      %p205 = scmp.ne.s32.totalorder %s191, %s192
      %p206 = scmp.eq.s32.totalorder %s25, 3
      %p207 = por %p205, %p206
      %p209 = scmp.ne.s32.totalorder %s192, %s208
      %p210 = scmp.eq.s32.totalorder %s25, 0
      %p211 = por %p209, %p210
      %s212 = ssub.s32 %s26, %s45
      %p213 = scmp.eq.s32.totalorder %s212, 0
      %s215 = sadd.s32 %s214, 1
      %s216 = scalar_select %p213, %s214, %s215
      %p219 = pneg %p213
      %p220 = scmp.eq.s32.totalorder %s19, 3
      %p221 = por %p219, %p220
      %p222 = scmp.ne.s32.totalorder %s214, %s217
      %p223 = scmp.eq.s32.totalorder %s19, 0
      %p224 = por %p222, %p223
      %p225 = scmp.ne.s32.totalorder %s214, %s217
      %p226 = scmp.eq.s32.totalorder %s24, 3
      %p227 = por %p225, %p226
      %p228 = scmp.ne.s32.totalorder %s217, %s218
      %p229 = scmp.eq.s32.totalorder %s24, 0
      %p230 = por %p228, %p229
      %p231 = scmp.ne.s32.totalorder %s217, %s218
      %p232 = scmp.eq.s32.totalorder %s25, 3
      %p233 = por %p231, %p232
      %p235 = scmp.ne.s32.totalorder %s218, %s234
      %p236 = scmp.eq.s32.totalorder %s25, 0
      %p237 = por %p235, %p236
      %s238 = ssub.s32 %s26, %s45
      %s239 = ssub.s32 %s27, %s41
      %s240 = sor.u32 %s238, %s239
      %p241 = scmp.eq.s32.totalorder %s240, 0
      %s243 = sadd.s32 %s242, 1
      %s244 = scalar_select %p241, %s242, %s243
      %p247 = pneg %p241
      %p248 = scmp.eq.s32.totalorder %s19, 3
      %p249 = por %p247, %p248
      %p250 = scmp.ne.s32.totalorder %s242, %s245
      %p251 = scmp.eq.s32.totalorder %s19, 0
      %p252 = por %p250, %p251
      %p253 = scmp.ne.s32.totalorder %s242, %s245
      %p254 = scmp.eq.s32.totalorder %s24, 3
      %p255 = por %p253, %p254
      %p256 = scmp.ne.s32.totalorder %s245, %s246
      %p257 = scmp.eq.s32.totalorder %s24, 0
      %p258 = por %p256, %p257
      %p259 = scmp.ne.s32.totalorder %s245, %s246
      %p260 = scmp.eq.s32.totalorder %s25, 3
      %p261 = por %p259, %p260
      %p263 = scmp.ne.s32.totalorder %s246, %s262
      %p264 = scmp.eq.s32.totalorder %s25, 0
      %p265 = por %p263, %p264
      %p266 = scmp.le.s32.totalorder 1, %s19
      %p267 = scmp.lt.s32.totalorder %s19, 5
      %p268 = pnand %p266, %p267
      %p269 = pneg %p268
      // Predicated region
      $region9: #{tpu_custom_call.1} parent=5 // pred_check
        _
      $region10: #{tpu_custom_call.1} parent=5 // pred_check_branch
        %271 = sbr.rel (%p268) target = $region12
      $region11: #{tpu_custom_call.1} parent=5 // pred_region
        %s272 = ssub.s32 %s19, 1
      $region12: #{tpu_custom_call.1} parent=5 // pred_fallthru
        _
      %p273 = scmp.lt.s32.totalorder %s19, 4
      // Predicated region
      $region13: #{tpu_custom_call.1} parent=5 // pred_check
        %p274 = pneg %p273
      $region14: #{tpu_custom_call.1} parent=5 // pred_check_branch
        %276 = sbr.rel (%p274) target = $region16
      $region15: #{tpu_custom_call.1} parent=5 // pred_region
        // Predicated region
        $region17: #{tpu_custom_call.1} parent=15 // pred_check
          %p277 = pneg %p62
        $region18: #{tpu_custom_call.1} parent=15 // pred_check_branch
          %279 = sbr.rel (%p277) target = $region20
        $region19: #{tpu_custom_call.1} parent=15 // pred_region
          %s280 = sand.u32 %s52, 1
          %s281 = sand.u32 %s52, 1
          %s282 = smul.addr %s281, 8
          %s283 = scalar_lea.vmem [#allocation6], %s282
          %s284 = smul.u32 2, %s27
          %s285 = smul.addr %s284, 2
          %s286 = sadd.s32 %s28, %s285
          %s287 = smul.addr %s26, 4
          %s288 = sadd.s32 %s286, %s287
          %s289 = smul.addr %s288, 4
          %s290 = scalar_lea.vmem %s0, %s289
          // Predicated region
          $region21: #{tpu_custom_call.1} parent=19 // pred_check
            _
          $region22: #{tpu_custom_call.1} parent=19 // pred_check_branch
            %292 = sbr.rel (0) target = $region24
          $region23: #{tpu_custom_call.1} parent=19 // pred_region
            // Predicated region
            $region25: #{tpu_custom_call.1} parent=23 // pred_check
              _
            $region26: #{tpu_custom_call.1} parent=23 // pred_check_branch
              %294 = sbr.rel target = $region28
            $region27: #{tpu_custom_call.1} parent=23 // pred_region
              // Predicated region
              $region40: #{tpu_custom_call.1} parent=27 // pred_check
                _
              $region41: #{tpu_custom_call.1} parent=27 // pred_check_branch
                %312 = sbr.rel (0) target = $region43
              $region42: #{tpu_custom_call.1} parent=27 // pred_region
                loop: start=0, step=1, limit=1
                $region44: #{tpu_custom_call.1} parent=42 // loop_pre_header
                  _
                $region45: #{tpu_custom_call.1} parent=42 // loop_header
                  %s314 = sphi 0, %s318
                  %p315 = scmp.ge.s32.totalorder %s314, 1
                  %s319 = sphi %s290, %s290
                  %s320 = sphi %s283, %s283
                $region46: #{tpu_custom_call.1} parent=42 // loop_header_branch
                  %317 = sbr.rel (%p315) target = $region50
                $region47: #{tpu_custom_call.1} parent=42 // loop_body
                  _
                $region48: #{tpu_custom_call.1} parent=42 // loop_footer
                  %s318 = sadd.s32 1, %s314
                $region49: #{tpu_custom_call.1} parent=42 // loop_footer_branch
                  %313 = sbr.rel target = $region45
                $region50: #{tpu_custom_call.1} parent=42 // loop_exit
                  _
                %s322 = ssub.s32 16, 1
                loop: start=0, step=1, limit=1
                $region51: #{tpu_custom_call.1} parent=42 // loop_pre_header
                  _
                $region52: #{tpu_custom_call.1} parent=42 // loop_header
                  %s324 = sphi 0, %s328
                  %p325 = scmp.ge.s32.totalorder %s324, 1
                  %s329 = sphi %s290, %s290
                  %s330 = sphi %s283, %s283
                $region53: #{tpu_custom_call.1} parent=42 // loop_header_branch
                  %327 = sbr.rel (%p325) target = $region57
                $region54: #{tpu_custom_call.1} parent=42 // loop_body
                  %v331 = vld [vmem:[%s329] sm:%s322]
                  %332 = vst [vmem:[%s330] sm:%s322] %v331
                  %v333 = vld [vmem:[%s329 + $0x8] sm:%s322]
                  %334 = vst [vmem:[%s330 + $0x4] sm:%s322] %v333
                $region55: #{tpu_custom_call.1} parent=42 // loop_footer
                  %s328 = sadd.s32 1, %s324
                $region56: #{tpu_custom_call.1} parent=42 // loop_footer_branch
                  %323 = sbr.rel target = $region52
                $region57: #{tpu_custom_call.1} parent=42 // loop_exit
                  _
              $region43: #{tpu_custom_call.1} parent=27 // pred_fallthru
                _
            $region28: #{tpu_custom_call.1} parent=23 // pred_fallthru
              _
            // Predicated region
            $region29: #{tpu_custom_call.1} parent=23 // pred_check
              _
            $region30: #{tpu_custom_call.1} parent=23 // pred_check_branch
              %296 = sbr.rel (0) target = $region32
            $region31: #{tpu_custom_call.1} parent=23 // pred_region
              %s298 = ssub.s32 16, 1
              loop: start=0, step=1, limit=1
              $region33: #{tpu_custom_call.1} parent=31 // loop_pre_header
                _
              $region34: #{tpu_custom_call.1} parent=31 // loop_header
                %s300 = sphi 0, %s304
                %p301 = scmp.ge.s32.totalorder %s300, 1
                %s305 = sphi %s290, %s290
                %s306 = sphi %s283, %s283
              $region35: #{tpu_custom_call.1} parent=31 // loop_header_branch
                %303 = sbr.rel (%p301) target = $region39
              $region36: #{tpu_custom_call.1} parent=31 // loop_body
                %v307 = vld [vmem:[%s305] sm:%s298]
                %308 = vst [vmem:[%s306] sm:%s298] %v307
                %v309 = vld [vmem:[%s305 + $0x8] sm:%s298]
                %310 = vst [vmem:[%s306 + $0x4] sm:%s298] %v309
              $region37: #{tpu_custom_call.1} parent=31 // loop_footer
                %s304 = sadd.s32 1, %s300
              $region38: #{tpu_custom_call.1} parent=31 // loop_footer_branch
                %299 = sbr.rel target = $region34
              $region39: #{tpu_custom_call.1} parent=31 // loop_exit
                _
            $region32: #{tpu_custom_call.1} parent=23 // pred_fallthru
              _
          $region24: #{tpu_custom_call.1} parent=19 // pred_fallthru
            _
          %335 = vnop
        $region20: #{tpu_custom_call.1} parent=15 // pred_fallthru
          _
        // Predicated region
        $region58: #{tpu_custom_call.1} parent=15 // pred_check
          %p336 = pneg %p90
        $region59: #{tpu_custom_call.1} parent=15 // pred_check_branch
          %338 = sbr.rel (%p336) target = $region61
        $region60: #{tpu_custom_call.1} parent=15 // pred_region
          %s339 = sand.u32 %s80, 1
          %s340 = scalar_lea.sflag [#allocation8], %s339
          %s341 = sand.u32 %s80, 1
          %s342 = smul.addr %s341, 64
          %s343 = scalar_lea.vmem [#allocation7], %s342
          %s344 = smul.u32 16, %s28
          %346 = vsyncadd %s340, 0
          %s347 = smul.addr %s26, 32
          %s348 = sadd.s32 %s344, %s347
          %s349 = smul.addr %s348, 4
          %s350 = scalar_lea.hbm %s1, %s349
          %s351 = sshll.u32 %s350, 4
          %s352 = int_to_ptr.hbm [resolvable:$true] %s351
          %s353 = sshll.u32 %s343, 4
          %s354 = int_to_ptr.vmem [resolvable:$true] %s353
          %359 = dma.hbm_to_vmem [thread:$0]  %s352, 1024, %s354, %s340, 64, 64, 4
        $region61: #{tpu_custom_call.1} parent=15 // pred_fallthru
          _
        // Predicated region
        $region62: #{tpu_custom_call.1} parent=15 // pred_check
          %p360 = pneg %p118
        $region63: #{tpu_custom_call.1} parent=15 // pred_check_branch
          %362 = sbr.rel (%p360) target = $region65
        $region64: #{tpu_custom_call.1} parent=15 // pred_region
          %s363 = smul.u32 2, %s27
          %p364 = scmp.lt.s32.totalorder %s26, 1
          %s365 = scalar_select %p364, %s26, 1
          %p366 = scmp.lt.s32.totalorder %s363, 1
          %s367 = scalar_select %p366, %s363, 1
          %s368 = smul.addr %s365, 2
          %s369 = sadd.s32 %s367, %s368
          %s370 = smul.addr %s369, 4
          %s371 = scalar_lea.vmem %s2, %s370
          %s372 = smul.u32 2, %s27
        $region65: #{tpu_custom_call.1} parent=15 // pred_fallthru
          _
        // Predicated region
        $region66: #{tpu_custom_call.1} parent=15 // pred_check
          %p373 = pneg %p144
        $region67: #{tpu_custom_call.1} parent=15 // pred_check_branch
          %375 = sbr.rel (%p373) target = $region69
        $region68: #{tpu_custom_call.1} parent=15 // pred_region
          %p376 = scmp.lt.s32.totalorder %s26, 1
          %s377 = scalar_select %p376, %s26, 1
          %s378 = smul.addr %s377, 4
          %s379 = scalar_lea.vmem %s3, %s378
        $region69: #{tpu_custom_call.1} parent=15 // pred_fallthru
          _
        // Predicated region
        $region70: #{tpu_custom_call.1} parent=15 // pred_check
          %p380 = pneg %p172
        $region71: #{tpu_custom_call.1} parent=15 // pred_check_branch
          %382 = sbr.rel (%p380) target = $region73
        $region72: #{tpu_custom_call.1} parent=15 // pred_region
          %s383 = smul.u32 2, %s27
          %p384 = scmp.lt.s32.totalorder %s26, 1
          %s385 = scalar_select %p384, %s26, 1
          %p386 = scmp.lt.s32.totalorder %s383, 1
          %s387 = scalar_select %p386, %s383, 1
          %s388 = smul.addr %s385, 2
          %s389 = sadd.s32 %s387, %s388
          %s390 = smul.addr %s389, 8
          %s391 = scalar_lea.vmem %s4, %s390
          %s392 = smul.u32 2, %s27
        $region73: #{tpu_custom_call.1} parent=15 // pred_fallthru
          _
        // Predicated region
        $region74: #{tpu_custom_call.1} parent=15 // pred_check
          %p393 = pneg %p198
        $region75: #{tpu_custom_call.1} parent=15 // pred_check_branch
          %395 = sbr.rel (%p393) target = $region77
        $region76: #{tpu_custom_call.1} parent=15 // pred_region
          %p396 = scmp.lt.s32.totalorder %s26, 1
          %s397 = scalar_select %p396, %s26, 1
          %s398 = smul.addr %s397, 4
          %s399 = scalar_lea.vmem %s5, %s398
        $region77: #{tpu_custom_call.1} parent=15 // pred_fallthru
          _
        // Predicated region
        $region78: #{tpu_custom_call.1} parent=15 // pred_check
          %p400 = pneg %p224
        $region79: #{tpu_custom_call.1} parent=15 // pred_check_branch
          %402 = sbr.rel (%p400) target = $region81
        $region80: #{tpu_custom_call.1} parent=15 // pred_region
          %p403 = scmp.lt.s32.totalorder %s26, 1
          %s404 = scalar_select %p403, %s26, 1
          %s405 = scalar_lea.vmem %s6, %s404
        $region81: #{tpu_custom_call.1} parent=15 // pred_fallthru
          _
      $region16: #{tpu_custom_call.1} parent=5 // pred_fallthru
        _
      %p406 = scmp.le.s32.totalorder 1, %s19
      %p407 = scmp.lt.s32.totalorder %s19, 5
      %p408 = pnand %p406, %p407
      %p409 = pneg %p408
      // Predicated region
      $region82: #{tpu_custom_call.1} parent=5 // pred_check
        _
      $region83: #{tpu_custom_call.1} parent=5 // pred_check_branch
        %411 = sbr.rel (%p408) target = $region85
      $region84: #{tpu_custom_call.1} parent=5 // pred_region
        %s412 = ssub.s32 %s19, 1
        %s413 = sand.u32 %s55, 1
        %s414 = sand.u32 %s55, 1
        %s415 = smul.addr %s414, 8
        %s416 = scalar_lea.vmem [#allocation6], %s415
        // Predicated region
        $region86: #{tpu_custom_call.1} parent=84 // pred_check
          %p417 = pneg %p68
        $region87: #{tpu_custom_call.1} parent=84 // pred_check_branch
          %419 = sbr.rel (%p417) target = $region89
        $region88: #{tpu_custom_call.1} parent=84 // pred_region
          _
        $region89: #{tpu_custom_call.1} parent=84 // pred_fallthru
          _
        %s420 = sand.u32 %s83, 1
        %s421 = scalar_lea.sflag [#allocation8], %s420
        %s422 = sand.u32 %s83, 1
        %s423 = smul.addr %s422, 64
        %s424 = scalar_lea.vmem [#allocation7], %s423
        // Predicated region
        $region90: #{tpu_custom_call.1} parent=84 // pred_check
          %p425 = pneg %p96
        $region91: #{tpu_custom_call.1} parent=84 // pred_check_branch
          %427 = sbr.rel (%p425) target = $region93
        $region92: #{tpu_custom_call.1} parent=84 // pred_region
          %429 = dma.done %s421, 1024
        $region93: #{tpu_custom_call.1} parent=84 // pred_fallthru
          _
        %s430 = sand.u32 %s55, 1
        %s431 = sand.u32 %s55, 1
        %s432 = smul.addr %s431, 8
        %s433 = scalar_lea.vmem [#allocation6], %s432
        %p434 = pneg %p68
        %p435 = pneg %p65
        %s436 = sand.u32 %s83, 1
        %s437 = scalar_lea.sflag [#allocation8], %s436
        %s438 = sand.u32 %s83, 1
        %s439 = smul.addr %s438, 64
        %s440 = scalar_lea.vmem [#allocation7], %s439
        %p441 = pneg %p96
        %p442 = pneg %p93
        %s443 = smul.u32 2, %s30
        %p444 = scmp.lt.s32.totalorder %s29, 1
        %s445 = scalar_select %p444, %s29, 1
        %p446 = scmp.lt.s32.totalorder %s443, 1
        %s447 = scalar_select %p446, %s443, 1
        %s448 = smul.addr %s445, 2
        %s449 = sadd.s32 %s447, %s448
        %s450 = smul.addr %s449, 4
        %s451 = scalar_lea.vmem %s2, %s450
        %p452 = pneg %p124
        %p453 = pneg %p121
        %p454 = scmp.lt.s32.totalorder %s29, 1
        %s455 = scalar_select %p454, %s29, 1
        %s456 = smul.addr %s455, 4
        %s457 = scalar_lea.vmem %s3, %s456
        %p458 = pneg %p150
        %p459 = pneg %p147
        %s460 = smul.u32 2, %s30
        %p461 = scmp.lt.s32.totalorder %s29, 1
        %s462 = scalar_select %p461, %s29, 1
        %p463 = scmp.lt.s32.totalorder %s460, 1
        %s464 = scalar_select %p463, %s460, 1
        %s465 = smul.addr %s462, 2
        %s466 = sadd.s32 %s464, %s465
        %s467 = smul.addr %s466, 8
        %s468 = scalar_lea.vmem %s4, %s467
        %p469 = pneg %p178
        %p470 = pneg %p175
        %p471 = scmp.lt.s32.totalorder %s29, 1
        %s472 = scalar_select %p471, %s29, 1
        %s473 = smul.addr %s472, 4
        %s474 = scalar_lea.vmem %s5, %s473
        %p475 = pneg %p204
        %p476 = pneg %p201
        %p477 = scmp.lt.s32.totalorder %s29, 1
        %s478 = scalar_select %p477, %s29, 1
        %s479 = scalar_lea.vmem %s6, %s478
        %p480 = pneg %p230
        %p481 = pneg %p227
        %p482 = pneg %p258
        %p483 = pneg %p255
        %s484 = sand.u32 %s245, 1
        %s485 = scalar_lea.sflag [#allocation9], %s484
        %s486 = sand.u32 %s245, 1
        %s487 = smul.addr %s486, 16
        %s488 = scalar_lea.vmem [#allocation10], %s487
        %s489 = smul.u32 2, %s30
        %s490 = smul.u32 16, %s31
        %s491 = smul.u32 2, %s30
        %p492 = scmp.lt.s32.totalorder %s29, 1
        %s493 = scalar_select %p492, %s29, 1
        %p494 = scmp.lt.s32.totalorder %s491, 1
        %s495 = scalar_select %p494, %s491, 1
        %s496 = smul.addr %s493, 2
        %s497 = sadd.s32 %s495, %s496
        %s498 = smul.addr %s497, 4
        %s499 = scalar_lea.vmem %s2, %s498
        %s500 = smul.u32 2, %s30
        %p501 = scmp.lt.s32.totalorder %s29, 1
        %s502 = scalar_select %p501, %s29, 1
        %s503 = smul.addr %s502, 4
        %s504 = scalar_lea.vmem %s3, %s503
        %s505 = smul.u32 2, %s30
        %p506 = scmp.lt.s32.totalorder %s29, 1
        %s507 = scalar_select %p506, %s29, 1
        %p508 = scmp.lt.s32.totalorder %s505, 1
        %s509 = scalar_select %p508, %s505, 1
        %s510 = smul.addr %s507, 2
        %s511 = sadd.s32 %s509, %s510
        %s512 = smul.addr %s511, 8
        %s513 = scalar_lea.vmem %s4, %s512
        %s514 = smul.u32 2, %s30
        %p515 = scmp.lt.s32.totalorder %s29, 1
        %s516 = scalar_select %p515, %s29, 1
        %s517 = smul.addr %s516, 4
        %s518 = scalar_lea.vmem %s5, %s517
        %p519 = scmp.lt.s32.totalorder %s29, 1
        %s520 = scalar_select %p519, %s29, 1
        %s521 = scalar_lea.vmem %s6, %s520
        %s522 = smul.u32 2, %s30
        %p524 = scmp.eq.s32.totalorder %s31, 0
        // Predicated region
        $region94: #{tpu_custom_call.1} parent=84 // pred_check
          %p525 = pneg %p524
        $region95: #{tpu_custom_call.1} parent=84 // pred_check_branch
          %527 = sbr.rel (%p525) target = $region97
        $region96: #{tpu_custom_call.1} parent=84 // pred_region
          %528 = vst [vmem:[#allocation2] sm:$0xff] 0.0
          %529 = vst [vmem:[#allocation2 + $0x8] sm:$0xff] 0.0
          %530 = vst [vmem:[#allocation3] sm:$0xff] 0.0
          %531 = vst [vmem:[#allocation3 + $0x8] sm:$0xff] 0.0
          %vm532 = vcmask 7168
          %533 = vst.msk [vmem:[#allocation4] sm:$0xff] %vm532, 0.0
          %534 = vst.msk [vmem:[#allocation4 + $0x8] sm:$0xff] %vm532, 0.0
          %535 = vst.msk [vmem:[#allocation5] sm:$0xff] %vm532, 0.0
          %536 = vst.msk [vmem:[#allocation5 + $0x8] sm:$0xff] %vm532, 0.0
        $region97: #{tpu_custom_call.1} parent=84 // pred_fallthru
          _
        %v537 = vld [vmem:[%s416] sm:$0xf]
        %v538 = vld [vmem:[%s416 + $0x4] sm:$0xf]
        %v539 = vld [vmem:[%s424] sm:$0xf]
        %v540 = vld [vmem:[%s424 + $0x4] sm:$0xf]
        %v541 = vld [vmem:[%s424 + $0x8] sm:$0xf]
        %v542 = vld [vmem:[%s424 + $0xc] sm:$0xf]
        %v543 = vld [vmem:[%s424 + $0x10] sm:$0xf]
        %v544 = vld [vmem:[%s424 + $0x14] sm:$0xf]
        %v545 = vld [vmem:[%s424 + $0x18] sm:$0xf]
        %v546 = vld [vmem:[%s424 + $0x1c] sm:$0xf]
        %v547 = vld [vmem:[%s424 + $0x20] sm:$0xf]
        %v548 = vld [vmem:[%s424 + $0x24] sm:$0xf]
        %v549 = vld [vmem:[%s424 + $0x28] sm:$0xf]
        %v550 = vld [vmem:[%s424 + $0x2c] sm:$0xf]
        %v551 = vld [vmem:[%s424 + $0x30] sm:$0xf]
        %v552 = vld [vmem:[%s424 + $0x34] sm:$0xf]
        %v553 = vld [vmem:[%s424 + $0x38] sm:$0xf]
        %v554 = vld [vmem:[%s424 + $0x3c] sm:$0xf]
        %v555 = vld [vmem:[#allocation2] sm:$0xff]
        %v556 = vld [vmem:[#allocation2 + $0x8] sm:$0xff]
        %v559 = vunpack.c.l.b16 %v537
        %v560 = vunpack.c.l.b16 %v538
        %v561 = vpack.c.b16 %v560, %v559
        %v579 = vunpack.c.l.b16 %v539
        %v580 = vunpack.c.l.b16 %v540
        %v581 = vunpack.c.l.b16 %v541
        %v582 = vunpack.c.l.b16 %v542
        %v583 = vunpack.c.l.b16 %v543
        %v584 = vunpack.c.l.b16 %v544
        %v585 = vunpack.c.l.b16 %v545
        %v586 = vunpack.c.l.b16 %v546
        %v587 = vunpack.c.l.b16 %v547
        %v588 = vunpack.c.l.b16 %v548
        %v589 = vunpack.c.l.b16 %v549
        %v590 = vunpack.c.l.b16 %v550
        %v591 = vunpack.c.l.b16 %v551
        %v592 = vunpack.c.l.b16 %v552
        %v593 = vunpack.c.l.b16 %v553
        %v594 = vunpack.c.l.b16 %v554
        %v595 = vpack.c.b16 %v580, %v579
        %v596 = vpack.c.b16 %v582, %v581
        %v597 = vpack.c.b16 %v584, %v583
        %v598 = vpack.c.b16 %v586, %v585
        %v599 = vpack.c.b16 %v588, %v587
        %v600 = vpack.c.b16 %v590, %v589
        %v601 = vpack.c.b16 %v592, %v591
        %v602 = vpack.c.b16 %v594, %v593
        %611 = vmatpush.bf16.msra.mxu0 %v602
        %612 = vmatpush.bf16.msra.mxu0 %v601
        %613 = vmatpush.bf16.msra.mxu0 %v600
        %614 = vmatpush.bf16.msra.mxu0 %v599
        %615 = vmatpush.bf16.msra.mxu0 %v598
        %616 = vmatpush.bf16.msra.mxu0 %v597
        %617 = vmatpush.bf16.msra.mxu0 %v596
        %618 = vmatpush.bf16.msra.mxu0 %v595
        %619 = vmatmul.bf16.gmra.mxu0 %v561
        %v620 = vpop.f32.mrf.mxu0
        %v621 = vadd.f32 0.0, %v620
        %v622 = vpop.f32.mrf.mxu0
        %v623 = vadd.f32 0.0, %v622
        %624 = vdwg.mxu0
        %v625 = vadd.f32 %v555, %v621
        %v626 = vadd.f32 %v556, %v623
        %627 = vst [vmem:[#allocation2] sm:$0xff] %v625
        %628 = vst [vmem:[#allocation2 + $0x8] sm:$0xff] %v626
        %v629 = vunpack.c.l.bf16 %v537
        %v630 = vunpack.c.l.bf16 %v538
        %v631 = vmax.f32 %v629, 0.0
        %v632 = vmax.f32 %v630, 0.0
        %v633 = vand.u32 2147483647, %v629
        %v634 = vand.u32 2147483647, %v630
        %v635 = vsub.f32 0.0, %v633
        %v636 = vsub.f32 0.0, %v634
        %v637 = vmul.f32 %v635, 1.442695
        %v638 = vpow.pop %v637
        %v639 = vmul.f32 %v636, 1.442695
        %v640 = vpow.pop %v639
        %v641 = vadd.f32 %v638, 1.0
        %v642 = vlog2.pop %v641
        %v643 = vmul.f32 %v642, 0.6931472
        %v644 = vmul.f32 -0.5, %v638
        %v645 = vadd.f32 %v644, 1.0
        %v646 = vmul.f32 %v645, %v638
        %v647 = vand.u32 2147483647, %v638
        %vm648 = vcmp.lt.f32.partialorder %v647, 0.0004427343
        %v649 = vsel %vm648, %v646, %v643
        %v650 = vadd.f32 %v640, 1.0
        %v651 = vlog2.pop %v650
        %v652 = vmul.f32 %v651, 0.6931472
        %v653 = vmul.f32 -0.5, %v640
        %v654 = vadd.f32 %v653, 1.0
        %v655 = vmul.f32 %v654, %v640
        %v656 = vand.u32 2147483647, %v640
        %vm657 = vcmp.lt.f32.partialorder %v656, 0.0004427343
        %v658 = vsel %vm657, %v655, %v652
        %v659 = vadd.f32 %v631, %v649
        %v660 = vadd.f32 %v632, %v658
        %v661 = vsub.f32 0.0, %v659
        %v662 = vsub.f32 0.0, %v660
        %v663 = vmul.f32 %v661, 1.442695
        %v664 = vpow.pop %v663
        %v665 = vmul.f32 %v662, 1.442695
        %v666 = vpow.pop %v665
        %v667 = vsub.f32 1.0, %v664
        %v668 = vsub.f32 1.0, %v666
        %v669 = vld [vmem:[#allocation4] sm:$0xff]
        %v670 = vld [vmem:[#allocation4 + $0x8] sm:$0xff]
        %671 = vadd.xlane.f32.xlu0 %v659
        %v672 = vpop.xlane.xlu0 %671
        %673 = vadd.xlane.f32.xlu0 %v660
        %v674 = vpop.xlane.xlu0 %673
        %v675 = vadd.f32 %v669, %v672
        %v676 = vadd.f32 %v670, %v674
        %vm677 = vcmask 7168
        %678 = vst.msk [vmem:[#allocation4] sm:$0xff] %vm677, %v675
        %679 = vst.msk [vmem:[#allocation4 + $0x8] sm:$0xff] %vm677, %v676
        %v680 = vld [vmem:[#allocation5] sm:$0xff]
        %v681 = vld [vmem:[#allocation5 + $0x8] sm:$0xff]
        %682 = vadd.xlane.f32.xlu0 %v667
        %v683 = vpop.xlane.xlu0 %682
        %684 = vadd.xlane.f32.xlu0 %v668
        %v685 = vpop.xlane.xlu0 %684
        %v686 = vadd.f32 %v680, %v683
        %v687 = vadd.f32 %v681, %v685
        %688 = vst.msk [vmem:[#allocation5] sm:$0xff] %vm677, %v686
        %689 = vst.msk [vmem:[#allocation5 + $0x8] sm:$0xff] %vm677, %v687
        %v690 = vld [vmem:[#allocation3] sm:$0xff]
        %v691 = vld [vmem:[#allocation3 + $0x8] sm:$0xff]
        %v692 = vpack.c.bf16 %v668, %v667
        %693 = vmatpush.bf16.msra.mxu0 %v602
        %694 = vmatpush.bf16.msra.mxu0 %v601
        %695 = vmatpush.bf16.msra.mxu0 %v600
        %696 = vmatpush.bf16.msra.mxu0 %v599
        %697 = vmatpush.bf16.msra.mxu0 %v598
        %698 = vmatpush.bf16.msra.mxu0 %v597
        %699 = vmatpush.bf16.msra.mxu0 %v596
        %700 = vmatpush.bf16.msra.mxu0 %v595
        %701 = vmatmul.bf16.gmra.mxu0 %v692
        %v702 = vpop.f32.mrf.mxu0
        %v703 = vadd.f32 0.0, %v702
        %v704 = vpop.f32.mrf.mxu0
        %v705 = vadd.f32 0.0, %v704
        %706 = vdwg.mxu0
        %v707 = vadd.f32 %v690, %v703
        %v708 = vadd.f32 %v691, %v705
        %709 = vst [vmem:[#allocation3] sm:$0xff] %v707
        %710 = vst [vmem:[#allocation3 + $0x8] sm:$0xff] %v708
        %p711 = scmp.eq.s32.totalorder %s31, 1
        // Predicated region
        $region98: #{tpu_custom_call.1} parent=84 // pred_check
          %p712 = pneg %p711
        $region99: #{tpu_custom_call.1} parent=84 // pred_check_branch
          %714 = sbr.rel (%p712) target = $region101
        $region100: #{tpu_custom_call.1} parent=84 // pred_region
          %v715 = vld [vmem:[%s499] sm:$0xf]
          %v716 = vld [vmem:[%s499 + $0x4] sm:$0xf]
          %v717 = vld [vmem:[%s504] sm:$0xf]
          %v718 = vld [vmem:[#allocation4] sm:$0xff]
          %v719 = vld [vmem:[#allocation4 + $0x8] sm:$0xff]
          %v720 = vld [vmem:[#allocation2] sm:$0xff]
          %v721 = vld [vmem:[#allocation2 + $0x8] sm:$0xff]
          %723 = vset.pattern.permute.xlu0 0
          %724 = vperm.xlu0 %723, %v718
          %v725 = vpop.permute.xlu0 %724
          %728 = vset.pattern.permute.xlu0 0
          %729 = vperm.xlu0 %728, %v719
          %v730 = vpop.permute.xlu0 %729
          %v732 = vsub.f32 %v725, %v720
          %v733 = vsub.f32 %v730, %v721
          %v734 = vmul.f32 %v732, 0.025
          %v735 = vmul.f32 %v733, 0.025
          %v736 = vld [vmem:[#allocation5] sm:$0xff]
          %v737 = vld [vmem:[#allocation5 + $0x8] sm:$0xff]
          %v738 = vld [vmem:[%s521] sm:$0x1]
          %740 = vset.pattern.permute.xlu0 0
          %741 = vperm.xlu0 %740, %v736
          %v742 = vpop.permute.xlu0 %741
          %745 = vset.pattern.permute.xlu0 0
          %746 = vperm.xlu0 %745, %v737
          %v747 = vpop.permute.xlu0 %746
          %v750 = vperm.slane %v738, 0
          %v752 = vadd.f32 %v742, %v750
          %v753 = vadd.f32 %v747, %v750
          %v754 = vadd.f32 %v752, 1.0
          %v755 = vadd.f32 %v753, 1.0
          %v756 = vrcp.pop %v754
          %v757 = vrcp.pop %v755
          %v758 = vld [vmem:[#allocation3] sm:$0xff]
          %v759 = vld [vmem:[#allocation3 + $0x8] sm:$0xff]
          %v760 = vmul.f32 %v758, 10.0
          %v761 = vmul.f32 %v759, 10.0
          %v762 = vadd.f32 %v760, 5.0
          %v763 = vadd.f32 %v761, 5.0
          %v764 = vmul.f32 %v762, %v756
          %v765 = vmul.f32 %v763, %v757
          %v766 = vsub.f32 5.0, %v764
          %v767 = vsub.f32 5.0, %v765
          %v768 = vld [vmem:[%s513] sm:$0xff]
          %v769 = vld [vmem:[%s513 + $0x8] sm:$0xff]
          %v770 = vld [vmem:[%s518] sm:$0xf]
          %772 = vset.pattern.permute.xlu0 0
          %773 = vperm.xlu0 %772, %v768
          %v774 = vpop.permute.xlu0 %773
          %777 = vset.pattern.permute.xlu0 0
          %778 = vperm.xlu0 %777, %v769
          %v779 = vpop.permute.xlu0 %778
          %v781 = vperm.slane %v770, 0
          %v782 = vsub.f32 %v774, %v781
          %v783 = vsub.f32 %v779, %v781
          %v784 = vand.u32 2147483647, %v782
          %v785 = vand.u32 2147483647, %v783
          %786 = vset.pattern.permute.xlu0 1
          %787 = vperm.xlu0 %786, %v768
          %v788 = vpop.permute.xlu0 %787
          %790 = vset.pattern.permute.xlu0 1
          %791 = vperm.xlu0 %790, %v769
          %v792 = vpop.permute.xlu0 %791
          %v794 = vperm.slane %v770, 1
          %v795 = vsub.f32 %v788, %v794
          %v796 = vsub.f32 %v792, %v794
          %v797 = vand.u32 2147483647, %v795
          %v798 = vand.u32 2147483647, %v796
          %v799 = vadd.f32 %v784, %v797
          %v800 = vadd.f32 %v785, %v798
          %801 = vset.pattern.permute.xlu0 2
          %802 = vperm.xlu0 %801, %v768
          %v803 = vpop.permute.xlu0 %802
          %805 = vset.pattern.permute.xlu0 2
          %806 = vperm.xlu0 %805, %v769
          %v807 = vpop.permute.xlu0 %806
          %v809 = vperm.slane %v770, 2
          %v810 = vsub.f32 %v803, %v809
          %v811 = vsub.f32 %v807, %v809
          %v812 = vand.u32 2147483647, %v810
          %v813 = vand.u32 2147483647, %v811
          %v814 = vadd.f32 %v799, %v812
          %v815 = vadd.f32 %v800, %v813
          %816 = vset.pattern.permute.xlu0 3
          %817 = vperm.xlu0 %816, %v768
          %v818 = vpop.permute.xlu0 %817
          %820 = vset.pattern.permute.xlu0 3
          %821 = vperm.xlu0 %820, %v769
          %v822 = vpop.permute.xlu0 %821
          %v824 = vperm.slane %v770, 3
          %v825 = vsub.f32 %v818, %v824
          %v826 = vsub.f32 %v822, %v824
          %v827 = vand.u32 2147483647, %v825
          %v828 = vand.u32 2147483647, %v826
          %v829 = vadd.f32 %v814, %v827
          %v830 = vadd.f32 %v815, %v828
          %v831 = vmul.f32 %v768, 0.5
          %v832 = vmul.f32 %v769, 0.5
          %835 = vrot.lane.b32.xlu0 %v831, 126
          %v836 = vpop.permute.xlu0 %835
          %837 = vrot.lane.b32.xlu0 %v832, 126
          %v838 = vpop.permute.xlu0 %837
          %v841 = vsub.f32 %v768, %v836
          %v842 = vsub.f32 %v769, %v838
          %v843 = vadd.f32 %v768, %v836
          %v844 = vadd.f32 %v769, %v838
          %v845 = vmul.f32 %v770, 0.5
          %v847 = vrot.slane %v845, 2
          %v849 = vsub.f32 %v770, %v847
          %v850 = vadd.f32 %v770, %v847
          %v851 = vsub.f32 %v843, %v841
          %v852 = vsub.f32 %v844, %v842
          %855 = vrot.lane.b32.xlu0 %v851, 127
          %v856 = vpop.permute.xlu0 %855
          %857 = vrot.lane.b32.xlu0 %v852, 127
          %v858 = vpop.permute.xlu0 %857
          %v861 = vmul.f32 %v851, %v856
          %v862 = vmul.f32 %v852, %v858
          %v863 = vsub.f32 %v850, %v849
          %v865 = vrot.slane %v863, 1
          %v867 = vmul.f32 %v863, %v865
          %869 = vset.pattern.permute.xlu0 0
          %870 = vperm.xlu0 %869, %v843
          %v871 = vpop.permute.xlu0 %870
          %874 = vset.pattern.permute.xlu0 0
          %875 = vperm.xlu0 %874, %v844
          %v876 = vpop.permute.xlu0 %875
          %v878 = vperm.slane %v850, 0
          %v879 = vmin.f32 %v871, %v878
          %v880 = vmin.f32 %v876, %v878
          %882 = vset.pattern.permute.xlu0 0
          %883 = vperm.xlu0 %882, %v841
          %v884 = vpop.permute.xlu0 %883
          %887 = vset.pattern.permute.xlu0 0
          %888 = vperm.xlu0 %887, %v842
          %v889 = vpop.permute.xlu0 %888
          %v891 = vperm.slane %v849, 0
          %v892 = vmax.f32 %v884, %v891
          %v893 = vmax.f32 %v889, %v891
          %v894 = vsub.f32 %v879, %v892
          %v895 = vsub.f32 %v880, %v893
          %v896 = vmax.f32 %v894, 0.0
          %v897 = vmax.f32 %v895, 0.0
          %898 = vset.pattern.permute.xlu0 1
          %899 = vperm.xlu0 %898, %v843
          %v900 = vpop.permute.xlu0 %899
          %902 = vset.pattern.permute.xlu0 1
          %903 = vperm.xlu0 %902, %v844
          %v904 = vpop.permute.xlu0 %903
          %v906 = vperm.slane %v850, 1
          %v907 = vmin.f32 %v900, %v906
          %v908 = vmin.f32 %v904, %v906
          %909 = vset.pattern.permute.xlu0 1
          %910 = vperm.xlu0 %909, %v841
          %v911 = vpop.permute.xlu0 %910
          %913 = vset.pattern.permute.xlu0 1
          %914 = vperm.xlu0 %913, %v842
          %v915 = vpop.permute.xlu0 %914
          %v917 = vperm.slane %v849, 1
          %v918 = vmax.f32 %v911, %v917
          %v919 = vmax.f32 %v915, %v917
          %v920 = vsub.f32 %v907, %v918
          %v921 = vsub.f32 %v908, %v919
          %v922 = vmax.f32 %v920, 0.0
          %v923 = vmax.f32 %v921, 0.0
          %v924 = vmul.f32 %v896, %v922
          %v925 = vmul.f32 %v897, %v923
          %927 = vset.pattern.permute.xlu0 0
          %928 = vperm.xlu0 %927, %v861
          %v929 = vpop.permute.xlu0 %928
          %932 = vset.pattern.permute.xlu0 0
          %933 = vperm.xlu0 %932, %v862
          %v934 = vpop.permute.xlu0 %933
          %v936 = vperm.slane %v867, 0
          %v937 = vadd.f32 %v929, %v936
          %v938 = vadd.f32 %v934, %v936
          %v939 = vsub.f32 %v937, %v924
          %v940 = vsub.f32 %v938, %v925
          %v941 = vrcp.pop %v939
          %v942 = vrcp.pop %v940
          %v943 = vmul.f32 %v924, %v941
          %v944 = vmul.f32 %v925, %v942
          %v945 = vmax.f32 %v871, %v878
          %v946 = vmax.f32 %v876, %v878
          %v947 = vmin.f32 %v884, %v891
          %v948 = vmin.f32 %v889, %v891
          %v949 = vsub.f32 %v945, %v947
          %v950 = vsub.f32 %v946, %v948
          %v951 = vmax.f32 %v949, 0.0
          %v952 = vmax.f32 %v950, 0.0
          %v953 = vmax.f32 %v900, %v906
          %v954 = vmax.f32 %v904, %v906
          %v955 = vmin.f32 %v911, %v917
          %v956 = vmin.f32 %v915, %v917
          %v957 = vsub.f32 %v953, %v955
          %v958 = vsub.f32 %v954, %v956
          %v959 = vmax.f32 %v957, 0.0
          %v960 = vmax.f32 %v958, 0.0
          %v961 = vmul.f32 %v951, %v959
          %v962 = vmul.f32 %v952, %v960
          %v963 = vsub.f32 %v961, %v939
          %v964 = vsub.f32 %v962, %v940
          %v965 = vrcp.pop %v961
          %v966 = vrcp.pop %v962
          %v967 = vmul.f32 %v963, %v965
          %v968 = vmul.f32 %v964, %v966
          %v969 = vsub.f32 %v943, %v967
          %v970 = vsub.f32 %v944, %v968
          %v973 = vunpack.c.l.b16 %v715
          %v974 = vunpack.c.l.b16 %v716
          %v975 = vpack.c.b16 %v974, %v973
          %vm976 = vcmask 64512
          %v978 = vsel %vm976, %v975, 0
          %vm980 = vcmask 1043456
          %v982 = vsel %vm980, %v717, 0
          %984 = vmatpush.bf16.msra.mxu0 0
          %985 = vmatpush.bf16.msra.mxu0 0
          %986 = vmatpush.bf16.msra.mxu0 0
          %987 = vmatpush.bf16.msra.mxu0 0
          %988 = vmatpush.bf16.msra.mxu0 0
          %989 = vmatpush.bf16.msra.mxu0 0
          %990 = vmatpush.bf16.msra.mxu0 0
          %991 = vmatpush.bf16.msra.mxu0 %v982
          %992 = vmatmul.bf16.gmra.mxu0 %v978
          %v993 = vpop.f32.mrf.mxu0
          %v994 = vadd.f32 %v734, %v993
          %v995 = vpop.f32.mrf.mxu0
          %v996 = vadd.f32 %v735, %v995
          %997 = vdwg.mxu0
          %v998 = vadd.f32 %v994, %v766
          %v999 = vadd.f32 %v996, %v767
          %v1000 = vmul.f32 %v829, 5.0
          %v1001 = vmul.f32 %v830, 5.0
          %v1002 = vadd.f32 %v998, %v1000
          %v1003 = vadd.f32 %v999, %v1001
          %v1004 = vmul.f32 %v969, 2.0
          %v1005 = vmul.f32 %v970, 2.0
          %v1006 = vsub.f32 %v1002, %v1004
          %v1007 = vsub.f32 %v1003, %v1005
          %1008 = vst [vmem:[%s488] sm:$0xff] %v1006
          %1009 = vst [vmem:[%s488 + $0x8] sm:$0xff] %v1007
        $region101: #{tpu_custom_call.1} parent=84 // pred_fallthru
          _
        %s1010 = sand.u32 %s245, 1
        %s1011 = scalar_lea.sflag [#allocation9], %s1010
        %s1012 = sand.u32 %s245, 1
        %s1013 = smul.addr %s1012, 16
        %s1014 = scalar_lea.vmem [#allocation10], %s1013
        // Predicated region
        $region102: #{tpu_custom_call.1} parent=84 // pred_check
          %p1015 = pneg %p255
        $region103: #{tpu_custom_call.1} parent=84 // pred_check_branch
          %1017 = sbr.rel (%p1015) target = $region105
        $region104: #{tpu_custom_call.1} parent=84 // pred_region
          %s1018 = smul.u32 2, %s30
          %1020 = vsyncadd %s1011, 0
          %s1021 = smul.addr %s29, 2
          %s1022 = sadd.s32 %s1018, %s1021
          %s1023 = smul.addr %s1022, 8
          %s1024 = scalar_lea.hbm %s7, %s1023
          %s1025 = sshll.u32 %s1014, 4
          %s1026 = int_to_ptr.vmem [resolvable:$true] %s1025
          %s1027 = sshll.u32 %s1024, 4
          %s1028 = int_to_ptr.hbm [resolvable:$true] %s1027
          %1033 = dma.vmem_to_hbm [thread:$0]  %s1026, 256, %s1028, %s1011, 128, 128, 8
        $region105: #{tpu_custom_call.1} parent=84 // pred_fallthru
          _
      $region85: #{tpu_custom_call.1} parent=5 // pred_fallthru
        _
      %p1034 = scmp.le.s32.totalorder 2, %s19
      // Predicated region
      $region106: #{tpu_custom_call.1} parent=5 // pred_check
        %p1035 = pneg %p1034
      $region107: #{tpu_custom_call.1} parent=5 // pred_check_branch
        %1037 = sbr.rel (%p1035) target = $region109
      $region108: #{tpu_custom_call.1} parent=5 // pred_region
        %s1038 = ssub.s32 %s19, 2
        // Predicated region
        $region110: #{tpu_custom_call.1} parent=108 // pred_check
          %p1039 = pneg %p261
        $region111: #{tpu_custom_call.1} parent=108 // pred_check_branch
          %1041 = sbr.rel (%p1039) target = $region113
        $region112: #{tpu_custom_call.1} parent=108 // pred_region
          %s1042 = sand.u32 %s246, 1
          %s1043 = scalar_lea.sflag [#allocation9], %s1042
          %s1044 = sand.u32 %s246, 1
          %s1045 = smul.addr %s1044, 16
          %s1046 = scalar_lea.vmem [#allocation10], %s1045
          %1048 = dma.done %s1043, 256
        $region113: #{tpu_custom_call.1} parent=108 // pred_fallthru
          _
      $region109: #{tpu_custom_call.1} parent=5 // pred_fallthru
        _
    $region6: #{tpu_custom_call.1} parent=1 // loop_footer
      %s23 = sadd.s32 1, %s19
    $region7: #{tpu_custom_call.1} parent=1 // loop_footer_branch
      %18 = sbr.rel target = $region3
    $region8: #{tpu_custom_call.1} parent=1 // loop_exit
      _
    %1049 = vsyncpa [#allocation8], 1
    %s1050 = scalar_lea.sflag [#allocation8], 1
    %1051 = vsyncpa %s1050, 1
    %1052 = vsyncpa [#allocation9], 1
    %s1053 = scalar_lea.sflag [#allocation9], 1
    %1054 = vsyncpa %s1053, 1

</llo_original>
